<compile_context>
chip_gen: v6e
topology: v6e:2x2x1
jax: 0.10.0
libtpu: 0.0.40
codegen_flags: <defaults>
</compile_context>

<pallas_src>
import functools
import numpy as np
import jax
import jax.numpy as jnp
from jax.experimental import pallas as pl
from jax.experimental.pallas import tpu as pltpu


# ----------------------------------------------------------------------------
# helpers
# ----------------------------------------------------------------------------
def _sigmoid(z):
    # 1/(1+exp(-z)) via tanh: one EUP transcendental, no overflow for large |z|.
    return 0.5 * (jnp.tanh(0.5 * z) + 1.0)


def _segment_prod_plan(seg):
    """Static doubling plan for a segmented row-product of window length `seg`.

    Starting from vals = [term], each step (lhs, rhs, shift) appends
    vals[lhs] * roll_up(vals[rhs], shift).  After all steps, vals[result]
    holds, in row r, the product of rows [r, r+seg) (valid whenever that
    window stays inside one segment).  O(log2(seg)) steps.
    """
    steps = []

    def emit(lhs, rhs, shift):
        steps.append((lhs, rhs, shift))
        return len(steps)                       # vals index of this result

    acc = {0: 0}                                # p -> vals index of [0, 2^p)
    p = 0
    while (1 << (p + 1)) <= seg:
        acc[p + 1] = emit(acc[p], acc[p], 1 << p)
        p += 1
    res, cur = None, 0
    for q in range(seg.bit_length()):
        if (seg >> q) & 1:
            if res is None:
                res, cur = acc[q], 1 << q
            else:
                res = emit(res, acc[q], cur)
                cur += 1 << q
    return steps, res


# ----------------------------------------------------------------------------
# Pallas kernel
# ----------------------------------------------------------------------------
def _pnet_kernel(Nin, Nout, N, K, B, H, x0,
                 x_ref, st_ref, w2_ref, b2_ref,
                 w1g_ref, b1g_ref, w2g_ref, b2g_ref, w3g_ref, b3g_ref,
                 a_ref, trep_ref, rsh_ref, psel_ref, w4_ref, b4_ref,
                 h4_ref, h3_ref, h2_ref, gp_ref):
    BN = B * N
    HNin = H * Nin
    C = Nin * BN

    def dot(a, b):
        # f32 x f32 MXU matmul; default precision (no explicit HIGHEST -- the
        # gating chain is latency-visible and these matmuls are tiny).
        return jnp.dot(a, b, preferred_element_type=jnp.float32)

    xb = x_ref[...]                                 # (Nin+1, tb); last row = 1

    # ---- Fourier(/polynomial) feature slab, batch on lanes -------------------
    # arg[c, :] = x[num(c), :] * scale(c) + phase(c); the scales n*pi*w and the
    # sin block's -pi/2 phase are folded into St wrapper-side, so one cos()
    # pass yields both cos and sin features.
    arg = dot(st_ref[...], xb)                      # (C, tb)
    feats = jnp.cos(arg)
    if B == 3:
        # four_poly(): row num*BN + 2N + n is arg**n (exact integer powers).
        # Row masks come from an in-kernel iota -> no captured array constants.
        r = jax.lax.broadcasted_iota(jnp.int32, (C, 1), 0) % BN
        n_exp = r - 2 * N                           # >= 0 only on poly rows
        poly = jnp.ones_like(arg)
        for m in range(1, N):
            poly = poly * jnp.where(n_exp >= m, arg, 1.0)
        feats = jnp.where(n_exp >= 0, poly, feats)

    # ---- h2: one block-diagonal matmul for all Nin*H fc2 readouts ------------
    h2 = dot(w2_ref[...], feats) + b2_ref[...]      # (HNin, tb)

    # ---- K gated heads fused into 3 matmuls ----------------------------------
    g = jnp.maximum(dot(w1g_ref[...], h2) + b1g_ref[...], 0.0)   # (K*10, tb)
    g = jnp.maximum(dot(w2g_ref[...], g) + b2g_ref[...], 0.0)    # (K*5,  tb)
    g = dot(w3g_ref[...], g) + b3g_ref[...]                      # (K*HNin, tb)

    # per-head LayerNorm (eps=1e-3, no affine): a single precomputed block-
    # averaging matrix gives segmented mean / variance on the idle MXU.
    mu = dot(a_ref[...], g)
    d = g - mu
    var = dot(a_ref[...], d * d)
    gn = d * jax.lax.rsqrt(var + 0.001)

    # sig_log(6 * LayerNorm(g), x0)
    s = 6.0 * _sigmoid(6.0 * gn)
    gp = _sigmoid(10.0 * (s - x0))                  # (K*HNin, tb)

    # ---- per-head product reduction ------------------------------------------
    # term rows are head-segmented; a log-depth shift-multiply doubling scheme
    # (row shifts = tiny 0/1 permutation matmuls) leaves the full per-head
    # product in row k*HNin, which a 0/1 selector matmul gathers into h3.
    h2rep = dot(trep_ref[...], h2)                  # (K*HNin, tb): h2 tiled K x
    term = gp * h2rep + 1.0
    steps, res = _segment_prod_plan(HNin)
    vals = [term]
    for i, (lhs, rhs, _shift) in enumerate(steps):  # shift baked into rsh_ref[i]
        vals.append(vals[lhs] * dot(rsh_ref[i], vals[rhs]))
    h3 = dot(psel_ref[...], vals[res])              # (K, tb)

    h4 = dot(w4_ref[...], h3) + b4_ref[...]         # (Nout, tb)

    # lane-dense (batch-on-lanes) writebacks
    h4_ref[...] = h4
    h3_ref[...] = h3
    h2_ref[...] = h2
    gp_ref[...] = gp


# ----------------------------------------------------------------------------
# Wrapper: weight packing (done once) + pallas_call
# ----------------------------------------------------------------------------
def pack_params(params, cfg):
    Nin, Nout, N, K, B, H = (cfg[k] for k in ("Nin", "Nout", "N", "K", "B", "H"))
    BN, HNin = B * N, H * Nin
    KH = K * HNin
    f32 = jnp.float32
    fc1w = params["fc1_w"][0]                       # (BN,) == fc1.weight[:, 0]

    # Fold the Fourier scales n*pi*w and the sin block's -pi/2 phase into one
    # (C, Nin+1) input-expansion matrix; pnet_forward appends a ones-row to x
    # so the phase rides the last column and a single cos() covers cos & sin.
    n_idx = jnp.arange(N, dtype=f32)
    scale_blk = [n_idx * np.pi * fc1w[:N], n_idx * np.pi * fc1w[N:2 * N]]
    phase_blk = [np.zeros((N,), np.float32),
                 np.full((N,), -np.pi / 2.0, np.float32)]
    if B == 3:
        scale_blk.append(fc1w[2 * N:3 * N])
        phase_blk.append(np.zeros((N,), np.float32))
    scale_blk = jnp.concatenate(scale_blk)                          # (BN,)
    phase_blk = np.concatenate(phase_blk)                           # (BN,)
    St = jnp.concatenate(
        [jnp.kron(jnp.eye(Nin, dtype=f32), scale_blk[:, None]),     # (C, Nin)
         jnp.asarray(np.tile(phase_blk, Nin))[:, None]],            # (C, 1)
        axis=1)

    # 0/1 helper matrices (segmented mean, K-fold tiling of h2, row shifts for
    # the per-head product, per-head row selector) -- all run on the idle MXU.
    A = np.kron(np.eye(K, dtype=np.float32),
                np.full((HNin, HNin), 1.0 / HNin, np.float32))      # (KH, KH)
    Trep = np.kron(np.ones((K, 1), np.float32),
                   np.eye(HNin, dtype=np.float32))                  # (KH, HNin)
    Psel = np.zeros((K, KH), np.float32)
    Psel[np.arange(K), np.arange(K) * HNin] = 1.0                   # (K, KH)
    steps, _ = _segment_prod_plan(HNin)
    shifts = [sh for (_, _, sh) in steps] or [0]
    Rshift = np.zeros((len(shifts), KH, KH), np.float32)
    for i, sh in enumerate(shifts):
        Rshift[i, np.arange(KH), (np.arange(KH) + sh) % KH] = 1.0

    bd = jax.scipy.linalg.block_diag
    return {
        "St": St,                                                    # (C, Nin+1)
        "W2t": bd(*[params["w2"][i].T for i in range(Nin)]),         # (HNin, C)
        "b2t": params["b2"].reshape(HNin, 1),
        "W1gt": jnp.transpose(params["w1g"], (0, 2, 1)).reshape(K * 10, HNin),
        "b1gt": params["b1g"].reshape(K * 10, 1),
        "W2gt": bd(*[params["w2g"][k].T for k in range(K)]),         # (K*5, K*10)
        "b2gt": params["b2g"].reshape(K * 5, 1),
        "W3gt": bd(*[params["w3g"][k].T for k in range(K)]),         # (KH, K*5)
        "b3gt": params["b3g"].reshape(KH, 1),
        "A": jnp.asarray(A),
        "Trep": jnp.asarray(Trep),
        "Rshift": jnp.asarray(Rshift),                               # (S, KH, KH)
        "Psel": jnp.asarray(Psel),
        "W4t": params["w4"].T,                                       # (Nout, K)
        "b4t": params["b4"].reshape(Nout, 1),
    }


def pnet_forward(x, packed, cfg, *, block_batch=None):
    Nin, Nout, N, K, B, H, x0 = (cfg[k] for k in
                                 ("Nin", "Nout", "N", "K", "B", "H", "x0"))
    batch = x.shape[0]
    HNin = H * Nin
    KH = K * HNin

    # batch tile: one block for small batches; for large batches 128-aligned
    # lane tiles with >=2 grid steps so both v7x TensorCores get work.
    if block_batch is None:
        block_batch = batch if batch <= 256 else min(
            512, max(128, (batch // 2) // 128 * 128))
    tb = min(block_batch, batch)
    if tb != batch and tb % 128 != 0:
        tb = (tb // 128) * 128                      # lane dim must be 128-aligned
        tb = batch if tb == 0 or tb >= batch else tb
    grid = (pl.cdiv(batch, tb),)

    # batch on the 128-lane axis: features live on sublanes, so the cos / tanh /
    # sigmoid / product work runs lane-dense and every output store is a
    # lane-dense slab; the appended ones-row carries the sin phase.
    xt = jnp.concatenate(
        [x.astype(jnp.float32).T, jnp.ones((1, batch), jnp.float32)], axis=0)

    weights = (packed["St"], packed["W2t"], packed["b2t"],
               packed["W1gt"], packed["b1gt"], packed["W2gt"], packed["b2gt"],
               packed["W3gt"], packed["b3gt"], packed["A"], packed["Trep"],
               packed["Rshift"], packed["Psel"], packed["W4t"], packed["b4t"])

    def full_spec(a):      # tiny weight: whole array resident each grid step
        return pl.BlockSpec(a.shape, lambda i, _nd=a.ndim: (0,) * _nd)

    def batch_spec(rows):  # (features, batch-tile) slab
        return pl.BlockSpec((rows, tb), lambda i: (0, i))

    kernel = functools.partial(_pnet_kernel, Nin, Nout, N, K, B, H, x0)

    h4_t, h3_t, h2_t, gp_t = pl.pallas_call(
        kernel,
        out_shape=(jax.ShapeDtypeStruct((Nout, batch), jnp.float32),
                   jax.ShapeDtypeStruct((K, batch), jnp.float32),
                   jax.ShapeDtypeStruct((HNin, batch), jnp.float32),
                   jax.ShapeDtypeStruct((KH, batch), jnp.float32)),
        grid=grid,
        in_specs=[batch_spec(Nin + 1)] + [full_spec(w) for w in weights],
        out_specs=(batch_spec(Nout), batch_spec(K),
                   batch_spec(HNin), batch_spec(KH)),
        compiler_params=pltpu.CompilerParams(
            dimension_semantics=("parallel",)),
    )(xt, *weights)

    # back to the PyTorch (batch, feature) convention (layout plumbing only)
    return h4_t.T, h3_t.T, h2_t.T, gp_t.T


# ----------------------------------------------------------------------------
# Deterministic parameter init (PyTorch nn.Linear default U(-1/sqrt(fan_in),.)).
# Weights stored pre-transposed as (fan_in, fan_out) so reference does h @ W.
# ----------------------------------------------------------------------------
def init_params(key, cfg):
    Nin, Nout, N, K, B, H = (cfg[k] for k in ("Nin", "Nout", "N", "K", "B", "H"))
    BN, HNin = B * N, H * Nin

    def uni(k, shape, fan_in):
        b = 1.0 / np.sqrt(fan_in)
        return jax.random.uniform(k, shape, jnp.float32, -b, b)

    ks = jax.random.split(key, 12)
    return {
        "fc1_w": uni(ks[0], (1, BN), 1),              # fc1.weight.T (bias=False)
        "w2":    uni(ks[1], (Nin, BN, H), BN),        # fc2[num*H+f].weight.T
        "b2":    uni(ks[2], (Nin, H), BN),
        "w1g":   uni(ks[3], (K, HNin, 10), HNin),
        "b1g":   uni(ks[4], (K, 10), HNin),
        "w2g":   uni(ks[5], (K, 10, 5), 10),
        "b2g":   uni(ks[6], (K, 5), 10),
        "w3g":   uni(ks[7], (K, 5, HNin), 5),
        "b3g":   uni(ks[8], (K, HNin), 5),
        "w4":    uni(ks[9], (K, Nout), K),
        "b4":    uni(ks[10], (1, Nout), K),
    }


# ----------------------------------------------------------------------------
# Pure-JAX reference (mirrors the PyTorch forward, incl. the B==3 four_poly path)
# ----------------------------------------------------------------------------
def pnet_reference(x, p, cfg, precision=jax.lax.Precision.HIGHEST):
    Nin, Nout, N, K, B, H, x0 = (cfg[k] for k in
                                 ("Nin", "Nout", "N", "K", "B", "H", "x0"))
    dot = functools.partial(jnp.dot, precision=precision)
    n_idx = jnp.arange(N, dtype=jnp.float32)[None, :]
    h2_cols = []
    for num in range(Nin):
        ele = x[:, num:num + 1]
        h1 = ele * p["fc1_w"]
        cosb = jnp.cos(n_idx * np.pi * h1[:, 0:N])
        sinb = jnp.sin(n_idx * np.pi * h1[:, N:2 * N])
        feats = [cosb, sinb]
        if B == 3:
            feats.append(jnp.concatenate(
                [h1[:, 2 * N + n:2 * N + n + 1] ** n for n in range(N)], axis=1))
        h1a = jnp.concatenate(feats, axis=1)
        h2_cols.append(dot(h1a, p["w2"][num]) + p["b2"][num])
    h2 = jnp.concatenate(h2_cols, axis=1)
    h3_cols, gp_cols = [], []
    for k in range(K):
        g = jnp.maximum(dot(h2, p["w1g"][k]) + p["b1g"][k], 0.0)
        g = jnp.maximum(dot(g, p["w2g"][k]) + p["b2g"][k], 0.0)
        g = dot(g, p["w3g"][k]) + p["b3g"][k]
        mu = jnp.mean(g, axis=1, keepdims=True)
        var = jnp.mean((g - mu) ** 2, axis=1, keepdims=True)
        gn = (g - mu) / jnp.sqrt(var + 0.001)
        s = 6.0 * jax.nn.sigmoid(6.0 * gn)
        g = jax.nn.sigmoid(10.0 * (s - x0))
        gp_cols.append(g)
        h3_cols.append(jnp.prod(g * h2 + 1.0, axis=1, keepdims=True))
    h3 = jnp.concatenate(h3_cols, axis=1)
    gp = jnp.concatenate(gp_cols, axis=1)
    h4 = dot(h3, p["w4"]) + p["b4"]
    return h4, h3, h2, gp


# ----------------------------------------------------------------------------
if __name__ == "__main__":
    def run_case(cfg, batch, key, block_batch=None):
        kx, kp = jax.random.split(key)
        x = jax.random.normal(kx, (batch, cfg["Nin"]), dtype=jnp.float32)
        params = init_params(kp, cfg)
        packed = pack_params(params, cfg)
        outs = jax.block_until_ready(
            pnet_forward(x, packed, cfg, block_batch=block_batch))
        refs = pnet_reference(x, params, cfg)
        # sig_log's steep slope (k=10) amplifies upstream rounding ~10-20x,
        # hence a slightly relaxed (but still bug-catching) tolerance.
        for got, want in zip(outs, refs):
            np.testing.assert_allclose(np.asarray(got), np.asarray(want),
                                       rtol=5e-3, atol=5e-3)

    key = jax.random.PRNGKey(0)
    k1, k2, k3 = jax.random.split(key, 3)
    # B == 2 path (four) and B == 3 path (four_poly), single batch block
    run_case(dict(Nin=4, Nout=3, N=4, K=5, B=2, H=2, x0=5.0), batch=8, key=k1)
    run_case(dict(Nin=3, Nout=2, N=4, K=4, B=3, H=2, x0=5.0), batch=8, key=k2)
    # multi-step grid with a partial last batch block (exercises the tiling)
    run_case(dict(Nin=4, Nout=3, N=4, K=5, B=2, H=2, x0=5.0), batch=200,
             key=k3, block_batch=128)
    print("KERNEL_OK")
</pallas_src>

<mosaic_0001>
module attributes {stable_mosaic.version = 11 : i64} {
  func.func @_pnet_kernel(%arg0: i32, %arg1: memref<5x8xf32, #tpu.memory_space<vmem>>, %arg2: memref<32x5xf32, #tpu.memory_space<vmem>>, %arg3: memref<8x32xf32, #tpu.memory_space<vmem>>, %arg4: memref<8x1xf32, #tpu.memory_space<vmem>>, %arg5: memref<50x8xf32, #tpu.memory_space<vmem>>, %arg6: memref<50x1xf32, #tpu.memory_space<vmem>>, %arg7: memref<25x50xf32, #tpu.memory_space<vmem>>, %arg8: memref<25x1xf32, #tpu.memory_space<vmem>>, %arg9: memref<40x25xf32, #tpu.memory_space<vmem>>, %arg10: memref<40x1xf32, #tpu.memory_space<vmem>>, %arg11: memref<40x40xf32, #tpu.memory_space<vmem>>, %arg12: memref<40x8xf32, #tpu.memory_space<vmem>>, %arg13: memref<3x40x40xf32, #tpu.memory_space<vmem>>, %arg14: memref<5x40xf32, #tpu.memory_space<vmem>>, %arg15: memref<3x5xf32, #tpu.memory_space<vmem>>, %arg16: memref<3x1xf32, #tpu.memory_space<vmem>>, %arg17: memref<3x8xf32, #tpu.memory_space<vmem>>, %arg18: memref<5x8xf32, #tpu.memory_space<vmem>>, %arg19: memref<8x8xf32, #tpu.memory_space<vmem>>, %arg20: memref<40x8xf32, #tpu.memory_space<vmem>>) attributes {dimension_semantics = [#tpu.dimension_semantics<parallel>], iteration_bounds = array<i64: 1>, scalar_prefetch = 0 : i64, scratch_operands = 0 : i64, tpu.core_type = #tpu.core_type<tc>, window_params = [{transform_indices = @transform_0, window_bounds = array<i64: 5, 8>}, {pipeline_mode = #tpu.pipeline_mode<synchronous>, transform_indices = @transform_1, window_bounds = array<i64: 32, 5>}, {pipeline_mode = #tpu.pipeline_mode<synchronous>, transform_indices = @transform_2, window_bounds = array<i64: 8, 32>}, {pipeline_mode = #tpu.pipeline_mode<synchronous>, transform_indices = @transform_3, window_bounds = array<i64: 8, 1>}, {pipeline_mode = #tpu.pipeline_mode<synchronous>, transform_indices = @transform_4, window_bounds = array<i64: 50, 8>}, {pipeline_mode = #tpu.pipeline_mode<synchronous>, transform_indices = @transform_5, window_bounds = array<i64: 50, 1>}, {pipeline_mode = #tpu.pipeline_mode<synchronous>, transform_indices = @transform_6, window_bounds = array<i64: 25, 50>}, {pipeline_mode = #tpu.pipeline_mode<synchronous>, transform_indices = @transform_7, window_bounds = array<i64: 25, 1>}, {pipeline_mode = #tpu.pipeline_mode<synchronous>, transform_indices = @transform_8, window_bounds = array<i64: 40, 25>}, {pipeline_mode = #tpu.pipeline_mode<synchronous>, transform_indices = @transform_9, window_bounds = array<i64: 40, 1>}, {pipeline_mode = #tpu.pipeline_mode<synchronous>, transform_indices = @transform_10, window_bounds = array<i64: 40, 40>}, {pipeline_mode = #tpu.pipeline_mode<synchronous>, transform_indices = @transform_11, window_bounds = array<i64: 40, 8>}, {pipeline_mode = #tpu.pipeline_mode<synchronous>, transform_indices = @transform_12, window_bounds = array<i64: 3, 40, 40>}, {pipeline_mode = #tpu.pipeline_mode<synchronous>, transform_indices = @transform_13, window_bounds = array<i64: 5, 40>}, {pipeline_mode = #tpu.pipeline_mode<synchronous>, transform_indices = @transform_14, window_bounds = array<i64: 3, 5>}, {pipeline_mode = #tpu.pipeline_mode<synchronous>, transform_indices = @transform_15, window_bounds = array<i64: 3, 1>}, {transform_indices = @transform_16, window_bounds = array<i64: 3, 8>}, {transform_indices = @transform_17, window_bounds = array<i64: 5, 8>}, {transform_indices = @transform_18, window_bounds = array<i64: 8, 8>}, {transform_indices = @transform_19, window_bounds = array<i64: 40, 8>}]} {
    %c0 = arith.constant 0 : index
    %c0_0 = arith.constant 0 : index
    %0 = vector.load %arg1[%c0, %c0_0] : memref<5x8xf32, #tpu.memory_space<vmem>>, vector<5x8xf32>
    %c0_1 = arith.constant 0 : index
    %c0_2 = arith.constant 0 : index
    %1 = vector.load %arg2[%c0_1, %c0_2] : memref<32x5xf32, #tpu.memory_space<vmem>>, vector<32x5xf32>
    %cst = arith.constant dense<0.000000e+00> : vector<32x8xf32>
    %2 = tpu.matmul %1, %0, %cst {dimension_numbers = #tpu.dot_dimension_numbers<[1], [0], [0], [1], [0, 0, 1, 1], [], []>} : vector<32x5xf32>, vector<5x8xf32>, vector<32x8xf32> -> vector<32x8xf32>
    %3 = math.cos %2 : vector<32x8xf32>
    %c0_3 = arith.constant 0 : index
    %c0_4 = arith.constant 0 : index
    %4 = vector.load %arg3[%c0_3, %c0_4] : memref<8x32xf32, #tpu.memory_space<vmem>>, vector<8x32xf32>
    %cst_5 = arith.constant dense<0.000000e+00> : vector<8x8xf32>
    %5 = tpu.matmul %4, %3, %cst_5 {dimension_numbers = #tpu.dot_dimension_numbers<[1], [0], [0], [1], [0, 0, 1, 1], [], []>} : vector<8x32xf32>, vector<32x8xf32>, vector<8x8xf32> -> vector<8x8xf32>
    %c0_6 = arith.constant 0 : index
    %c0_7 = arith.constant 0 : index
    %6 = vector.load %arg4[%c0_6, %c0_7] : memref<8x1xf32, #tpu.memory_space<vmem>>, vector<8x1xf32>
    %7 = vector.broadcast %6 : vector<8x1xf32> to vector<8x8xf32>
    %8 = arith.addf %5, %7 : vector<8x8xf32>
    %c0_8 = arith.constant 0 : index
    %c0_9 = arith.constant 0 : index
    %9 = vector.load %arg5[%c0_8, %c0_9] : memref<50x8xf32, #tpu.memory_space<vmem>>, vector<50x8xf32>
    %cst_10 = arith.constant dense<0.000000e+00> : vector<50x8xf32>
    %10 = tpu.matmul %9, %8, %cst_10 {dimension_numbers = #tpu.dot_dimension_numbers<[1], [0], [0], [1], [0, 0, 1, 1], [], []>} : vector<50x8xf32>, vector<8x8xf32>, vector<50x8xf32> -> vector<50x8xf32>
    %c0_11 = arith.constant 0 : index
    %c0_12 = arith.constant 0 : index
    %11 = vector.load %arg6[%c0_11, %c0_12] : memref<50x1xf32, #tpu.memory_space<vmem>>, vector<50x1xf32>
    %12 = vector.broadcast %11 : vector<50x1xf32> to vector<50x8xf32>
    %13 = arith.addf %10, %12 : vector<50x8xf32>
    %cst_13 = arith.constant 0.000000e+00 : f32
    %14 = vector.broadcast %cst_13 : f32 to vector<50x8xf32>
    %15 = arith.maximumf %13, %14 : vector<50x8xf32>
    %c0_14 = arith.constant 0 : index
    %c0_15 = arith.constant 0 : index
    %16 = vector.load %arg7[%c0_14, %c0_15] : memref<25x50xf32, #tpu.memory_space<vmem>>, vector<25x50xf32>
    %cst_16 = arith.constant dense<0.000000e+00> : vector<25x8xf32>
    %17 = tpu.matmul %16, %15, %cst_16 {dimension_numbers = #tpu.dot_dimension_numbers<[1], [0], [0], [1], [0, 0, 1, 1], [], []>} : vector<25x50xf32>, vector<50x8xf32>, vector<25x8xf32> -> vector<25x8xf32>
    %c0_17 = arith.constant 0 : index
    %c0_18 = arith.constant 0 : index
    %18 = vector.load %arg8[%c0_17, %c0_18] : memref<25x1xf32, #tpu.memory_space<vmem>>, vector<25x1xf32>
    %19 = vector.broadcast %18 : vector<25x1xf32> to vector<25x8xf32>
    %20 = arith.addf %17, %19 : vector<25x8xf32>
    %cst_19 = arith.constant 0.000000e+00 : f32
    %21 = vector.broadcast %cst_19 : f32 to vector<25x8xf32>
    %22 = arith.maximumf %20, %21 : vector<25x8xf32>
    %c0_20 = arith.constant 0 : index
    %c0_21 = arith.constant 0 : index
    %23 = vector.load %arg9[%c0_20, %c0_21] : memref<40x25xf32, #tpu.memory_space<vmem>>, vector<40x25xf32>
    %cst_22 = arith.constant dense<0.000000e+00> : vector<40x8xf32>
    %24 = tpu.matmul %23, %22, %cst_22 {dimension_numbers = #tpu.dot_dimension_numbers<[1], [0], [0], [1], [0, 0, 1, 1], [], []>} : vector<40x25xf32>, vector<25x8xf32>, vector<40x8xf32> -> vector<40x8xf32>
    %c0_23 = arith.constant 0 : index
    %c0_24 = arith.constant 0 : index
    %25 = vector.load %arg10[%c0_23, %c0_24] : memref<40x1xf32, #tpu.memory_space<vmem>>, vector<40x1xf32>
    %26 = vector.broadcast %25 : vector<40x1xf32> to vector<40x8xf32>
    %27 = arith.addf %24, %26 : vector<40x8xf32>
    %c0_25 = arith.constant 0 : index
    %c0_26 = arith.constant 0 : index
    %28 = vector.load %arg11[%c0_25, %c0_26] : memref<40x40xf32, #tpu.memory_space<vmem>>, vector<40x40xf32>
    %cst_27 = arith.constant dense<0.000000e+00> : vector<40x8xf32>
    %29 = tpu.matmul %28, %27, %cst_27 {dimension_numbers = #tpu.dot_dimension_numbers<[1], [0], [0], [1], [0, 0, 1, 1], [], []>} : vector<40x40xf32>, vector<40x8xf32>, vector<40x8xf32> -> vector<40x8xf32>
    %30 = arith.subf %27, %29 : vector<40x8xf32>
    %c0_28 = arith.constant 0 : index
    %c0_29 = arith.constant 0 : index
    %31 = vector.load %arg11[%c0_28, %c0_29] : memref<40x40xf32, #tpu.memory_space<vmem>>, vector<40x40xf32>
    %32 = arith.mulf %30, %30 : vector<40x8xf32>
    %cst_30 = arith.constant dense<0.000000e+00> : vector<40x8xf32>
    %33 = tpu.matmul %31, %32, %cst_30 {dimension_numbers = #tpu.dot_dimension_numbers<[1], [0], [0], [1], [0, 0, 1, 1], [], []>} : vector<40x40xf32>, vector<40x8xf32>, vector<40x8xf32> -> vector<40x8xf32>
    %cst_31 = arith.constant 1.000000e-03 : f32
    %34 = vector.broadcast %cst_31 : f32 to vector<40x8xf32>
    %35 = arith.addf %33, %34 : vector<40x8xf32>
    %36 = math.rsqrt %35 : vector<40x8xf32>
    %37 = arith.mulf %30, %36 : vector<40x8xf32>
    %cst_32 = arith.constant 6.000000e+00 : f32
    %38 = vector.broadcast %cst_32 : f32 to vector<40x8xf32>
    %39 = arith.mulf %38, %37 : vector<40x8xf32>
    %cst_33 = arith.constant 5.000000e-01 : f32
    %40 = vector.broadcast %cst_33 : f32 to vector<40x8xf32>
    %41 = arith.mulf %40, %39 : vector<40x8xf32>
    %42 = math.tanh %41 : vector<40x8xf32>
    %cst_34 = arith.constant 1.000000e+00 : f32
    %43 = vector.broadcast %cst_34 : f32 to vector<40x8xf32>
    %44 = arith.addf %42, %43 : vector<40x8xf32>
    %cst_35 = arith.constant 5.000000e-01 : f32
    %45 = vector.broadcast %cst_35 : f32 to vector<40x8xf32>
    %46 = arith.mulf %45, %44 : vector<40x8xf32>
    %cst_36 = arith.constant 6.000000e+00 : f32
    %47 = vector.broadcast %cst_36 : f32 to vector<40x8xf32>
    %48 = arith.mulf %47, %46 : vector<40x8xf32>
    %cst_37 = arith.constant 5.000000e+00 : f32
    %49 = vector.broadcast %cst_37 : f32 to vector<40x8xf32>
    %50 = arith.subf %48, %49 : vector<40x8xf32>
    %cst_38 = arith.constant 1.000000e+01 : f32
    %51 = vector.broadcast %cst_38 : f32 to vector<40x8xf32>
    %52 = arith.mulf %51, %50 : vector<40x8xf32>
    %cst_39 = arith.constant 5.000000e-01 : f32
    %53 = vector.broadcast %cst_39 : f32 to vector<40x8xf32>
    %54 = arith.mulf %53, %52 : vector<40x8xf32>
    %55 = math.tanh %54 : vector<40x8xf32>
    %cst_40 = arith.constant 1.000000e+00 : f32
    %56 = vector.broadcast %cst_40 : f32 to vector<40x8xf32>
    %57 = arith.addf %55, %56 : vector<40x8xf32>
    %cst_41 = arith.constant 5.000000e-01 : f32
    %58 = vector.broadcast %cst_41 : f32 to vector<40x8xf32>
    %59 = arith.mulf %58, %57 : vector<40x8xf32>
    %c0_42 = arith.constant 0 : index
    %c0_43 = arith.constant 0 : index
    %60 = vector.load %arg12[%c0_42, %c0_43] : memref<40x8xf32, #tpu.memory_space<vmem>>, vector<40x8xf32>
    %cst_44 = arith.constant dense<0.000000e+00> : vector<40x8xf32>
    %61 = tpu.matmul %60, %8, %cst_44 {dimension_numbers = #tpu.dot_dimension_numbers<[1], [0], [0], [1], [0, 0, 1, 1], [], []>} : vector<40x8xf32>, vector<8x8xf32>, vector<40x8xf32> -> vector<40x8xf32>
    %62 = arith.mulf %59, %61 : vector<40x8xf32>
    %cst_45 = arith.constant 1.000000e+00 : f32
    %63 = vector.broadcast %cst_45 : f32 to vector<40x8xf32>
    %64 = arith.addf %62, %63 : vector<40x8xf32>
    %c0_46 = arith.constant 0 : index
    %c0_47 = arith.constant 0 : index
    %c0_48 = arith.constant 0 : index
    %65 = vector.load %arg13[%c0_46, %c0_47, %c0_48] : memref<3x40x40xf32, #tpu.memory_space<vmem>>, vector<1x40x40xf32>
    %66 = vector.shape_cast %65 : vector<1x40x40xf32> to vector<40x40xf32>
    %cst_49 = arith.constant dense<0.000000e+00> : vector<40x8xf32>
    %67 = tpu.matmul %66, %64, %cst_49 {dimension_numbers = #tpu.dot_dimension_numbers<[1], [0], [0], [1], [0, 0, 1, 1], [], []>} : vector<40x40xf32>, vector<40x8xf32>, vector<40x8xf32> -> vector<40x8xf32>
    %68 = arith.mulf %64, %67 : vector<40x8xf32>
    %c1 = arith.constant 1 : index
    %c0_50 = arith.constant 0 : index
    %c0_51 = arith.constant 0 : index
    %69 = vector.load %arg13[%c1, %c0_50, %c0_51] : memref<3x40x40xf32, #tpu.memory_space<vmem>>, vector<1x40x40xf32>
    %70 = vector.shape_cast %69 : vector<1x40x40xf32> to vector<40x40xf32>
    %cst_52 = arith.constant dense<0.000000e+00> : vector<40x8xf32>
    %71 = tpu.matmul %70, %68, %cst_52 {dimension_numbers = #tpu.dot_dimension_numbers<[1], [0], [0], [1], [0, 0, 1, 1], [], []>} : vector<40x40xf32>, vector<40x8xf32>, vector<40x8xf32> -> vector<40x8xf32>
    %72 = arith.mulf %68, %71 : vector<40x8xf32>
    %c2 = arith.constant 2 : index
    %c0_53 = arith.constant 0 : index
    %c0_54 = arith.constant 0 : index
    %73 = vector.load %arg13[%c2, %c0_53, %c0_54] : memref<3x40x40xf32, #tpu.memory_space<vmem>>, vector<1x40x40xf32>
    %74 = vector.shape_cast %73 : vector<1x40x40xf32> to vector<40x40xf32>
    %cst_55 = arith.constant dense<0.000000e+00> : vector<40x8xf32>
    %75 = tpu.matmul %74, %72, %cst_55 {dimension_numbers = #tpu.dot_dimension_numbers<[1], [0], [0], [1], [0, 0, 1, 1], [], []>} : vector<40x40xf32>, vector<40x8xf32>, vector<40x8xf32> -> vector<40x8xf32>
    %76 = arith.mulf %72, %75 : vector<40x8xf32>
    %c0_56 = arith.constant 0 : index
    %c0_57 = arith.constant 0 : index
    %77 = vector.load %arg14[%c0_56, %c0_57] : memref<5x40xf32, #tpu.memory_space<vmem>>, vector<5x40xf32>
    %cst_58 = arith.constant dense<0.000000e+00> : vector<5x8xf32>
    %78 = tpu.matmul %77, %76, %cst_58 {dimension_numbers = #tpu.dot_dimension_numbers<[1], [0], [0], [1], [0, 0, 1, 1], [], []>} : vector<5x40xf32>, vector<40x8xf32>, vector<5x8xf32> -> vector<5x8xf32>
    %c0_59 = arith.constant 0 : index
    %c0_60 = arith.constant 0 : index
    %79 = vector.load %arg15[%c0_59, %c0_60] : memref<3x5xf32, #tpu.memory_space<vmem>>, vector<3x5xf32>
    %cst_61 = arith.constant dense<0.000000e+00> : vector<3x8xf32>
    %80 = tpu.matmul %79, %78, %cst_61 {dimension_numbers = #tpu.dot_dimension_numbers<[1], [0], [0], [1], [0, 0, 1, 1], [], []>} : vector<3x5xf32>, vector<5x8xf32>, vector<3x8xf32> -> vector<3x8xf32>
    %c0_62 = arith.constant 0 : index
    %c0_63 = arith.constant 0 : index
    %81 = vector.load %arg16[%c0_62, %c0_63] : memref<3x1xf32, #tpu.memory_space<vmem>>, vector<3x1xf32>
    %82 = vector.broadcast %81 : vector<3x1xf32> to vector<3x8xf32>
    %83 = arith.addf %80, %82 : vector<3x8xf32>
    %c0_64 = arith.constant 0 : index
    %c0_65 = arith.constant 0 : index
    %84 = vector.load %arg17[%c0_64, %c0_65] : memref<3x8xf32, #tpu.memory_space<vmem>>, vector<3x8xf32>
    tpu.vector_store %arg17[%c0_64, %c0_65], %83 {strides = array<i32>} : memref<3x8xf32, #tpu.memory_space<vmem>>, vector<3x8xf32>,
    %c0_66 = arith.constant 0 : index
    %c0_67 = arith.constant 0 : index
    %85 = vector.load %arg18[%c0_66, %c0_67] : memref<5x8xf32, #tpu.memory_space<vmem>>, vector<5x8xf32>
    tpu.vector_store %arg18[%c0_66, %c0_67], %78 {strides = array<i32>} : memref<5x8xf32, #tpu.memory_space<vmem>>, vector<5x8xf32>,
    %c0_68 = arith.constant 0 : index
    %c0_69 = arith.constant 0 : index
    %86 = vector.load %arg19[%c0_68, %c0_69] : memref<8x8xf32, #tpu.memory_space<vmem>>, vector<8x8xf32>
    tpu.vector_store %arg19[%c0_68, %c0_69], %8 {strides = array<i32>} : memref<8x8xf32, #tpu.memory_space<vmem>>, vector<8x8xf32>,
    %c0_70 = arith.constant 0 : index
    %c0_71 = arith.constant 0 : index
    %87 = vector.load %arg20[%c0_70, %c0_71] : memref<40x8xf32, #tpu.memory_space<vmem>>, vector<40x8xf32>
    tpu.vector_store %arg20[%c0_70, %c0_71], %59 {strides = array<i32>} : memref<40x8xf32, #tpu.memory_space<vmem>>, vector<40x8xf32>,
    return
  }
  func.func @transform_0(%arg0: i32) -> (i32, i32) {
    %c0_i32 = arith.constant 0 : i32
    %c0_i32_0 = arith.constant 0 : i32
    return %c0_i32, %arg0 : i32, i32
  }
  func.func @transform_1(%arg0: i32) -> (i32, i32) {
    %c0_i32 = arith.constant 0 : i32
    %c0_i32_0 = arith.constant 0 : i32
    %c0_i32_1 = arith.constant 0 : i32
    return %c0_i32, %c0_i32_0 : i32, i32
  }
  func.func @transform_2(%arg0: i32) -> (i32, i32) {
    %c0_i32 = arith.constant 0 : i32
    %c0_i32_0 = arith.constant 0 : i32
    %c0_i32_1 = arith.constant 0 : i32
    return %c0_i32, %c0_i32_0 : i32, i32
  }
  func.func @transform_3(%arg0: i32) -> (i32, i32) {
    %c0_i32 = arith.constant 0 : i32
    %c0_i32_0 = arith.constant 0 : i32
    %c0_i32_1 = arith.constant 0 : i32
    return %c0_i32, %c0_i32_0 : i32, i32
  }
  func.func @transform_4(%arg0: i32) -> (i32, i32) {
    %c0_i32 = arith.constant 0 : i32
    %c0_i32_0 = arith.constant 0 : i32
    %c0_i32_1 = arith.constant 0 : i32
    return %c0_i32, %c0_i32_0 : i32, i32
  }
  func.func @transform_5(%arg0: i32) -> (i32, i32) {
    %c0_i32 = arith.constant 0 : i32
    %c0_i32_0 = arith.constant 0 : i32
    %c0_i32_1 = arith.constant 0 : i32
    return %c0_i32, %c0_i32_0 : i32, i32
  }
  func.func @transform_6(%arg0: i32) -> (i32, i32) {
    %c0_i32 = arith.constant 0 : i32
    %c0_i32_0 = arith.constant 0 : i32
    %c0_i32_1 = arith.constant 0 : i32
    return %c0_i32, %c0_i32_0 : i32, i32
  }
  func.func @transform_7(%arg0: i32) -> (i32, i32) {
    %c0_i32 = arith.constant 0 : i32
    %c0_i32_0 = arith.constant 0 : i32
    %c0_i32_1 = arith.constant 0 : i32
    return %c0_i32, %c0_i32_0 : i32, i32
  }
  func.func @transform_8(%arg0: i32) -> (i32, i32) {
    %c0_i32 = arith.constant 0 : i32
    %c0_i32_0 = arith.constant 0 : i32
    %c0_i32_1 = arith.constant 0 : i32
    return %c0_i32, %c0_i32_0 : i32, i32
  }
  func.func @transform_9(%arg0: i32) -> (i32, i32) {
    %c0_i32 = arith.constant 0 : i32
    %c0_i32_0 = arith.constant 0 : i32
    %c0_i32_1 = arith.constant 0 : i32
    return %c0_i32, %c0_i32_0 : i32, i32
  }
  func.func @transform_10(%arg0: i32) -> (i32, i32) {
    %c0_i32 = arith.constant 0 : i32
    %c0_i32_0 = arith.constant 0 : i32
    %c0_i32_1 = arith.constant 0 : i32
    return %c0_i32, %c0_i32_0 : i32, i32
  }
  func.func @transform_11(%arg0: i32) -> (i32, i32) {
    %c0_i32 = arith.constant 0 : i32
    %c0_i32_0 = arith.constant 0 : i32
    %c0_i32_1 = arith.constant 0 : i32
    return %c0_i32, %c0_i32_0 : i32, i32
  }
  func.func @transform_12(%arg0: i32) -> (i32, i32, i32) {
    %c0_i32 = arith.constant 0 : i32
    %c0_i32_0 = arith.constant 0 : i32
    %c0_i32_1 = arith.constant 0 : i32
    %c0_i32_2 = arith.constant 0 : i32
    return %c0_i32, %c0_i32_0, %c0_i32_1 : i32, i32, i32
  }
  func.func @transform_13(%arg0: i32) -> (i32, i32) {
    %c0_i32 = arith.constant 0 : i32
    %c0_i32_0 = arith.constant 0 : i32
    %c0_i32_1 = arith.constant 0 : i32
    return %c0_i32, %c0_i32_0 : i32, i32
  }
  func.func @transform_14(%arg0: i32) -> (i32, i32) {
    %c0_i32 = arith.constant 0 : i32
    %c0_i32_0 = arith.constant 0 : i32
    %c0_i32_1 = arith.constant 0 : i32
    return %c0_i32, %c0_i32_0 : i32, i32
  }
  func.func @transform_15(%arg0: i32) -> (i32, i32) {
    %c0_i32 = arith.constant 0 : i32
    %c0_i32_0 = arith.constant 0 : i32
    %c0_i32_1 = arith.constant 0 : i32
    return %c0_i32, %c0_i32_0 : i32, i32
  }
  func.func @transform_16(%arg0: i32) -> (i32, i32) {
    %c0_i32 = arith.constant 0 : i32
    %c0_i32_0 = arith.constant 0 : i32
    return %c0_i32, %arg0 : i32, i32
  }
  func.func @transform_17(%arg0: i32) -> (i32, i32) {
    %c0_i32 = arith.constant 0 : i32
    %c0_i32_0 = arith.constant 0 : i32
    return %c0_i32, %arg0 : i32, i32
  }
  func.func @transform_18(%arg0: i32) -> (i32, i32) {
    %c0_i32 = arith.constant 0 : i32
    %c0_i32_0 = arith.constant 0 : i32
    return %c0_i32, %arg0 : i32, i32
  }
  func.func @transform_19(%arg0: i32) -> (i32, i32) {
    %c0_i32 = arith.constant 0 : i32
    %c0_i32_0 = arith.constant 0 : i32
    return %c0_i32, %arg0 : i32, i32
  }
}

</mosaic_0001>

<llo_original>
// kernel: tpu_custom_call.1
$region0: #{tpu_custom_call.1}
  #allocation0 [shape = 'u32[]', space=smem, size = 0x4, offset = 0x4, fixed_abs, tag = 'smem constant byte address 0x4 - core index']
  #allocation1 [shape = 'u32[144,128]{1,0:T(1,128)}', space=vmem, size = 0x12000, scoped, tag = 'internal scratch']
  %s0 = inlined_call_operand.vmem [shape: f32[5,8], index: 0, kind: input, shape index: {}]
  %s1 = inlined_call_operand.vmem [shape: f32[32,5], index: 1, kind: input, shape index: {}]
  %s2 = inlined_call_operand.vmem [shape: f32[8,32], index: 2, kind: input, shape index: {}]
  %s3 = inlined_call_operand.vmem [shape: f32[8,1], index: 3, kind: input, shape index: {}]
  %s4 = inlined_call_operand.vmem [shape: f32[50,8], index: 4, kind: input, shape index: {}]
  %s5 = inlined_call_operand.vmem [shape: f32[50,1], index: 5, kind: input, shape index: {}]
  %s6 = inlined_call_operand.vmem [shape: f32[25,50], index: 6, kind: input, shape index: {}]
  %s7 = inlined_call_operand.vmem [shape: f32[25,1], index: 7, kind: input, shape index: {}]
  %s8 = inlined_call_operand.vmem [shape: f32[40,25], index: 8, kind: input, shape index: {}]
  %s9 = inlined_call_operand.vmem [shape: f32[40,1], index: 9, kind: input, shape index: {}]
  %s10 = inlined_call_operand.vmem [shape: f32[40,40], index: 10, kind: input, shape index: {}]
  %s11 = inlined_call_operand.vmem [shape: f32[40,8], index: 11, kind: input, shape index: {}]
  %s12 = inlined_call_operand.vmem [shape: f32[3,40,40], index: 12, kind: input, shape index: {}]
  %s13 = inlined_call_operand.vmem [shape: f32[5,40], index: 13, kind: input, shape index: {}]
  %s14 = inlined_call_operand.vmem [shape: f32[3,5], index: 14, kind: input, shape index: {}]
  %s15 = inlined_call_operand.vmem [shape: f32[3,1], index: 15, kind: input, shape index: {}]
  %s16 = inlined_call_operand.hbm [shape: f32[3,8], index: 16, kind: output, shape index: {0}]
  %s17 = inlined_call_operand.hbm [shape: f32[5,8], index: 17, kind: output, shape index: {1}]
  %s18 = inlined_call_operand.hbm [shape: f32[8,8], index: 18, kind: output, shape index: {2}]
  %s19 = inlined_call_operand.vmem [shape: f32[40,8], index: 19, kind: output, shape index: {3}]
  %20 = xla_tuple %s16, %s17, %s18, %s19
  %s21 = sld [smem:[#allocation0]]
  $region98: #{tpu_custom_call.1} parent=0
    _
  %s23 = ssub.s32 1, %s21
  %s24 = scalar_select 0, %s23, %s21
  $region1: #{tpu_custom_call.1} parent=0
    #allocation2 [shape = 'u8[2048]{0}', space=vmem, size = 0x800, scoped, tag = 'output window, operand 0, single buffered']
    #allocation3 [shape = 's32[1]{0}', space=sflag, size = 0x4, scoped, tag = 'scoped memory for tpu_custom_call.1']
    #allocation4 [shape = 'u8[4096]{0}', space=vmem, size = 0x1000, scoped, tag = 'output window, operand 1, single buffered']
    #allocation5 [shape = 's32[1]{0}', space=sflag, size = 0x4, scoped, tag = 'scoped memory for tpu_custom_call.1']
    #allocation6 [shape = 'u8[4096]{0}', space=vmem, size = 0x1000, scoped, tag = 'output window, operand 2, single buffered']
    %25 = vsyncpa [#allocation3], 0
    %26 = vsyncpa [#allocation5], 0
    // Predicated region
    $region2: #{tpu_custom_call.1} parent=1 // pred_check
      _
    $region3: #{tpu_custom_call.1} parent=1 // pred_check_branch
      %28 = sbr.rel (0) target = $region5
    $region4: #{tpu_custom_call.1} parent=1 // pred_region
      _
    $region5: #{tpu_custom_call.1} parent=1 // pred_fallthru
      _
    // Predicated region
    $region6: #{tpu_custom_call.1} parent=1 // pred_check
      _
    $region7: #{tpu_custom_call.1} parent=1 // pred_check_branch
      %30 = sbr.rel (0) target = $region9
    $region8: #{tpu_custom_call.1} parent=1 // pred_region
      _
    $region9: #{tpu_custom_call.1} parent=1 // pred_fallthru
      _
    // Predicated region
    $region10: #{tpu_custom_call.1} parent=1 // pred_check
      _
    $region11: #{tpu_custom_call.1} parent=1 // pred_check_branch
      %32 = sbr.rel (0) target = $region13
    $region12: #{tpu_custom_call.1} parent=1 // pred_region
      _
    $region13: #{tpu_custom_call.1} parent=1 // pred_fallthru
      _
    // Predicated region
    $region14: #{tpu_custom_call.1} parent=1 // pred_check
      _
    $region15: #{tpu_custom_call.1} parent=1 // pred_check_branch
      %34 = sbr.rel (0) target = $region17
    $region16: #{tpu_custom_call.1} parent=1 // pred_region
      _
    $region17: #{tpu_custom_call.1} parent=1 // pred_fallthru
      _
    // Predicated region
    $region18: #{tpu_custom_call.1} parent=1 // pred_check
      _
    $region19: #{tpu_custom_call.1} parent=1 // pred_check_branch
      %36 = sbr.rel (0) target = $region21
    $region20: #{tpu_custom_call.1} parent=1 // pred_region
      _
    $region21: #{tpu_custom_call.1} parent=1 // pred_fallthru
      _
    // Predicated region
    $region22: #{tpu_custom_call.1} parent=1 // pred_check
      _
    $region23: #{tpu_custom_call.1} parent=1 // pred_check_branch
      %38 = sbr.rel (0) target = $region25
    $region24: #{tpu_custom_call.1} parent=1 // pred_region
      _
    $region25: #{tpu_custom_call.1} parent=1 // pred_fallthru
      _
    // Predicated region
    $region26: #{tpu_custom_call.1} parent=1 // pred_check
      _
    $region27: #{tpu_custom_call.1} parent=1 // pred_check_branch
      %40 = sbr.rel (0) target = $region29
    $region28: #{tpu_custom_call.1} parent=1 // pred_region
      _
    $region29: #{tpu_custom_call.1} parent=1 // pred_fallthru
      _
    // Predicated region
    $region30: #{tpu_custom_call.1} parent=1 // pred_check
      _
    $region31: #{tpu_custom_call.1} parent=1 // pred_check_branch
      %42 = sbr.rel (0) target = $region33
    $region32: #{tpu_custom_call.1} parent=1 // pred_region
      _
    $region33: #{tpu_custom_call.1} parent=1 // pred_fallthru
      _
    // Predicated region
    $region34: #{tpu_custom_call.1} parent=1 // pred_check
      _
    $region35: #{tpu_custom_call.1} parent=1 // pred_check_branch
      %44 = sbr.rel (0) target = $region37
    $region36: #{tpu_custom_call.1} parent=1 // pred_region
      _
    $region37: #{tpu_custom_call.1} parent=1 // pred_fallthru
      _
    // Predicated region
    $region38: #{tpu_custom_call.1} parent=1 // pred_check
      _
    $region39: #{tpu_custom_call.1} parent=1 // pred_check_branch
      %46 = sbr.rel (0) target = $region41
    $region40: #{tpu_custom_call.1} parent=1 // pred_region
      _
    $region41: #{tpu_custom_call.1} parent=1 // pred_fallthru
      _
    // Predicated region
    $region42: #{tpu_custom_call.1} parent=1 // pred_check
      _
    $region43: #{tpu_custom_call.1} parent=1 // pred_check_branch
      %48 = sbr.rel (0) target = $region45
    $region44: #{tpu_custom_call.1} parent=1 // pred_region
      _
    $region45: #{tpu_custom_call.1} parent=1 // pred_fallthru
      _
    // Predicated region
    $region46: #{tpu_custom_call.1} parent=1 // pred_check
      _
    $region47: #{tpu_custom_call.1} parent=1 // pred_check_branch
      %50 = sbr.rel (0) target = $region49
    $region48: #{tpu_custom_call.1} parent=1 // pred_region
      _
    $region49: #{tpu_custom_call.1} parent=1 // pred_fallthru
      _
    // Predicated region
    $region50: #{tpu_custom_call.1} parent=1 // pred_check
      _
    $region51: #{tpu_custom_call.1} parent=1 // pred_check_branch
      %52 = sbr.rel (0) target = $region53
    $region52: #{tpu_custom_call.1} parent=1 // pred_region
      _
    $region53: #{tpu_custom_call.1} parent=1 // pred_fallthru
      _
    // Predicated region
    $region54: #{tpu_custom_call.1} parent=1 // pred_check
      _
    $region55: #{tpu_custom_call.1} parent=1 // pred_check_branch
      %54 = sbr.rel (0) target = $region57
    $region56: #{tpu_custom_call.1} parent=1 // pred_region
      _
    $region57: #{tpu_custom_call.1} parent=1 // pred_fallthru
      _
    // Predicated region
    $region58: #{tpu_custom_call.1} parent=1 // pred_check
      _
    $region59: #{tpu_custom_call.1} parent=1 // pred_check_branch
      %56 = sbr.rel (0) target = $region61
    $region60: #{tpu_custom_call.1} parent=1 // pred_region
      _
    $region61: #{tpu_custom_call.1} parent=1 // pred_fallthru
      _
    // Predicated region
    $region62: #{tpu_custom_call.1} parent=1 // pred_check
      _
    $region63: #{tpu_custom_call.1} parent=1 // pred_check_branch
      %58 = sbr.rel (0) target = $region65
    $region64: #{tpu_custom_call.1} parent=1 // pred_region
      _
    $region65: #{tpu_custom_call.1} parent=1 // pred_fallthru
      _
    %v59 = vld [vmem:[%s0] sm:$0x1f]
    %v60 = vld [vmem:[%s1] sm:$0xff]
    %v61 = vld [vmem:[%s1 + $0x8] sm:$0xff]
    %v62 = vld [vmem:[%s1 + $0x10] sm:$0xff]
    %v63 = vld [vmem:[%s1 + $0x18] sm:$0xff]
    %vm64 = vcmask 39936
    %v66 = vsel %vm64, %v60, 0
    %v69 = vsel %vm64, %v61, 0
    %v72 = vsel %vm64, %v62, 0
    %v75 = vsel %vm64, %v63, 0
    %vm77 = vcmask 1044480
    %v79 = vsel %vm77, %v59, 0
    %81 = vmatprep.subr.mxu0 0.0
    %82 = vmatpush1.msra.mxu0 0.0
    %83 = vmatprep.subr.mxu0 0.0
    %84 = vmatpush1.msra.mxu0 0.0
    %85 = vmatprep.subr.mxu0 0.0
    %86 = vmatpush1.msra.mxu0 0.0
    %87 = vmatprep.subr.mxu0 0.0
    %88 = vmatpush1.msra.mxu0 0.0
    %89 = vmatprep.subr.mxu0 0.0
    %90 = vmatpush1.msra.mxu0 0.0
    %91 = vmatprep.subr.mxu0 0.0
    %92 = vmatpush1.msra.mxu0 0.0
    %93 = vmatprep.subr.mxu0 0.0
    %94 = vmatpush1.msra.mxu0 0.0
    %95 = vmatprep.subr.mxu0 0.0
    %96 = vmatpush1.msra.mxu0 0.0
    %97 = vmatprep.subr.mxu0 0.0
    %98 = vmatpush1.msra.mxu0 0.0
    %99 = vmatprep.subr.mxu0 0.0
    %100 = vmatpush1.msra.mxu0 0.0
    %101 = vmatprep.subr.mxu0 0.0
    %102 = vmatpush1.msra.mxu0 0.0
    %103 = vmatprep.subr.mxu0 0.0
    %104 = vmatpush1.msra.mxu0 0.0
    %105 = vmatprep.subr.mxu0 0.0
    %106 = vmatpush1.msra.mxu0 0.0
    %107 = vmatprep.subr.mxu0 0.0
    %108 = vmatpush1.msra.mxu0 0.0
    %109 = vmatprep.subr.mxu0 0.0
    %110 = vmatpush1.msra.mxu0 0.0
    %111 = vmatprep.subr.mxu0 0.0
    %112 = vmatpush1.msra.mxu0 %v79
    %113 = vmatprep.subr.mxu0 0.0
    %114 = vmatpush2.msra.mxu0 0.0
    %115 = vmatprep.subr.mxu0 0.0
    %116 = vmatpush2.msra.mxu0 0.0
    %117 = vmatprep.subr.mxu0 0.0
    %118 = vmatpush2.msra.mxu0 0.0
    %119 = vmatprep.subr.mxu0 0.0
    %120 = vmatpush2.msra.mxu0 0.0
    %121 = vmatprep.subr.mxu0 0.0
    %122 = vmatpush2.msra.mxu0 0.0
    %123 = vmatprep.subr.mxu0 0.0
    %124 = vmatpush2.msra.mxu0 0.0
    %125 = vmatprep.subr.mxu0 0.0
    %126 = vmatpush2.msra.mxu0 0.0
    %127 = vmatprep.subr.mxu0 0.0
    %128 = vmatpush2.msra.mxu0 0.0
    %129 = vmatprep.subr.mxu0 0.0
    %130 = vmatpush2.msra.mxu0 0.0
    %131 = vmatprep.subr.mxu0 0.0
    %132 = vmatpush2.msra.mxu0 0.0
    %133 = vmatprep.subr.mxu0 0.0
    %134 = vmatpush2.msra.mxu0 0.0
    %135 = vmatprep.subr.mxu0 0.0
    %136 = vmatpush2.msra.mxu0 0.0
    %137 = vmatprep.subr.mxu0 0.0
    %138 = vmatpush2.msra.mxu0 0.0
    %139 = vmatprep.subr.mxu0 0.0
    %140 = vmatpush2.msra.mxu0 0.0
    %141 = vmatprep.subr.mxu0 0.0
    %142 = vmatpush2.msra.mxu0 0.0
    %143 = vmatprep.subr.mxu0 0.0
    %144 = vmatpush2.msra.mxu0 0.0
    %145 = vmatprep.mubr.f32.mxu0 0.0
    %146 = vmatmul.mubr.f32.gmra.mxu0 %v66
    %v147 = vpop.f32.mrf.mxu0
    %v148 = vadd.f32 0.0, %v147
    %v149 = vpop.f32.mrf.mxu0
    %150 = vmatprep.mubr.f32.mxu0 0.0
    %151 = vmatmul.mubr.f32.gmra.mxu0 %v69
    %v152 = vpop.f32.mrf.mxu0
    %v153 = vadd.f32 0.0, %v152
    %v154 = vpop.f32.mrf.mxu0
    %155 = vmatprep.mubr.f32.mxu0 0.0
    %156 = vmatmul.mubr.f32.gmra.mxu0 %v72
    %v157 = vpop.f32.mrf.mxu0
    %v158 = vadd.f32 0.0, %v157
    %v159 = vpop.f32.mrf.mxu0
    %160 = vmatprep.mubr.f32.mxu0 0.0
    %161 = vmatmul.mubr.f32.gmra.mxu0 %v75
    %v162 = vpop.f32.mrf.mxu0
    %v163 = vadd.f32 0.0, %v162
    %v164 = vpop.f32.mrf.mxu0
    %165 = vdwg.mxu0
    %v166 = vand.u32 2147483647, %v148
    %vm167 = vcmp.le.f32.partialorder %v166, 0.7853982
    %vm168 = vcmp.lt.s32.totalorder %v148, 0
    %v169 = vand.u32 %v148, 2139095040
    %v170 = vshrl.u32 %v169, 23
    %v171 = vsub.s32 %v170, 127
    %v172 = vand.u32 2147483647, %v148
    %v173 = vand.u32 %v172, 8388607
    %v174 = vor.u32 %v173, 8388608
    %v175 = vsub.s32 0, %v174
    %v176 = vadd.s32 %v171, 1
    %vm177 = vcmp.gt.s32.totalorder %v176, 0
    %v178 = vsel %vm177, %v176, 0
    %v179 = vshrl.u32 %v178, 5
    %v180 = vand.u32 %v178, 31
    %v181 = vsub.s32 32, %v180
    %v182 = vshrl.u32 683565275, %v181
    %v183 = vshll.u32 683565275, %v180
    %v184 = vshrl.u32 2475754826, %v181
    %v185 = vor.u32 %v183, %v184
    %v186 = vshll.u32 2475754826, %v180
    %v187 = vshrl.u32 2131351028, %v181
    %v188 = vor.u32 %v186, %v187
    %v189 = vshll.u32 2131351028, %v180
    %v190 = vshrl.u32 2102212464, %v181
    %v191 = vor.u32 %v189, %v190
    %v192 = vshll.u32 2102212464, %v180
    %v193 = vshrl.u32 920167782, %v181
    %v194 = vor.u32 %v192, %v193
    %v195 = vshll.u32 920167782, %v180
    %v196 = vshrl.u32 1326507024, %v181
    %v197 = vor.u32 %v195, %v196
    %vm198 = vcmp.lt.s32.totalorder %v179, 1
    %vm199 = vcmp.lt.s32.totalorder %v179, 2
    %vm200 = vcmp.lt.s32.totalorder %v179, 3
    %vm201 = vcmp.lt.s32.totalorder %v179, 4
    %v202 = vsel %vm198, %v182, %v185
    %v203 = vsel %vm201, %v191, 2102212464
    %v204 = vsel %vm200, %v188, %v203
    %v205 = vsel %vm199, %v202, %v204
    %v206 = vsel %vm198, %v185, %v188
    %v207 = vsel %vm201, %v194, 920167782
    %v208 = vsel %vm200, %v191, %v207
    %v209 = vsel %vm199, %v206, %v208
    %v210 = vsel %vm198, %v188, %v191
    %v211 = vsel %vm201, %v197, 1326507024
    %v212 = vsel %vm200, %v194, %v211
    %v213 = vsel %vm199, %v210, %v212
    %v214 = vshll.u32 %v174, 8
    %v215 = vmul.u32.u64.compose %v214, %v213
    %v216 = vextract.low.u32 %v215
    %v217 = vextract.high.u32 %v215
    %v218 = vmul.u32.u64.compose %v214, %v209
    %v219 = vextract.low.u32 %v218
    %v220 = vextract.high.u32 %v218
    %v221 = vmul.u32 %v214, %v205
    %v222 = vadd.s32 %v217, %v219
    %vm223 = vc.u32 %v217, %v219
    %v224 = vadd.s32 %v220, 1
    %v225 = vsel %vm223, %v224, %v220
    %v226 = vadd.s32 %v221, %v225
    %v227 = vadd.s32 %v226, 536870912
    %v228 = vshrl.u32 %v227, 30
    %v229 = vshll.u32 %v228, 30
    %v230 = vsub.s32 %v226, %v229
    %vm231 = vcmp.lt.s32.totalorder %v230, 0
    %v232 = vsub.s32 0, %v230
    %v233 = vsel %vm231, %v232, %v230
    %v234 = vclz %v233
    %v235 = vsub.s32 %v234, 2
    %vm236 = vcmp.gt.s32.totalorder 0, %v235
    %v237 = vsel %vm236, 0, %v235
    %v238 = vsub.s32 32, %v237
    %v239 = vshll.u32 %v230, %v237
    %v240 = vshrl.u32 %v222, %v238
    %v241 = vor.u32 %v239, %v240
    %v242 = vsub.s32 4294967266, %v237
    %v243 = vadd.s32 %v242, 127
    %v244 = vshll.u32 %v243, 23
    %v245 = vor.u32 4788187, %v244
    %v246 = vand.u32 2147483647, %v245
    %v248 = vcvt.s32.f32 %v241
    %v249 = vmul.f32 %v248, %v246
    %v250 = vxor.u32 %v249, 2147483648
    %v251 = vsel %vm168, %v250, %v249
    %v252 = vsub.s32 4, %v228
    %v253 = vsel %vm168, %v252, %v228
    %v254 = vsel %vm167, %v148, %v251
    %v255 = vsel %vm167, 0, %v253
    %v256 = vcosq.f32.pop %v254
    %v257 = vsinq.f32.pop %v254
    %vm258 = vweird.f32 %v148
    %v259 = vand.u32 %v255, 3
    %vm260 = vcmp.lt.s32.totalorder %v259, 2
    %vm261 = vcmp.eq.s32.totalorder %v259, 0
    %v262 = vxor.u32 %v257, 2147483648
    %v263 = vsel %vm261, %v256, %v262
    %vm264 = vcmp.eq.s32.totalorder %v259, 2
    %v265 = vxor.u32 %v256, 2147483648
    %v266 = vsel %vm264, %v265, %v257
    %v267 = vsel %vm260, %v263, %v266
    %v268 = vsel %vm258, nan, %v267
    %v269 = vand.u32 2147483647, %v153
    %vm270 = vcmp.le.f32.partialorder %v269, 0.7853982
    %vm271 = vcmp.lt.s32.totalorder %v153, 0
    %v272 = vand.u32 %v153, 2139095040
    %v273 = vshrl.u32 %v272, 23
    %v274 = vsub.s32 %v273, 127
    %v275 = vand.u32 2147483647, %v153
    %v276 = vand.u32 %v275, 8388607
    %v277 = vor.u32 %v276, 8388608
    %v278 = vsub.s32 0, %v277
    %v279 = vadd.s32 %v274, 1
    %vm280 = vcmp.gt.s32.totalorder %v279, 0
    %v281 = vsel %vm280, %v279, 0
    %v282 = vshrl.u32 %v281, 5
    %v283 = vand.u32 %v281, 31
    %v284 = vsub.s32 32, %v283
    %v285 = vshrl.u32 683565275, %v284
    %v286 = vshll.u32 683565275, %v283
    %v287 = vshrl.u32 2475754826, %v284
    %v288 = vor.u32 %v286, %v287
    %v289 = vshll.u32 2475754826, %v283
    %v290 = vshrl.u32 2131351028, %v284
    %v291 = vor.u32 %v289, %v290
    %v292 = vshll.u32 2131351028, %v283
    %v293 = vshrl.u32 2102212464, %v284
    %v294 = vor.u32 %v292, %v293
    %v295 = vshll.u32 2102212464, %v283
    %v296 = vshrl.u32 920167782, %v284
    %v297 = vor.u32 %v295, %v296
    %v298 = vshll.u32 920167782, %v283
    %v299 = vshrl.u32 1326507024, %v284
    %v300 = vor.u32 %v298, %v299
    %vm301 = vcmp.lt.s32.totalorder %v282, 1
    %vm302 = vcmp.lt.s32.totalorder %v282, 2
    %vm303 = vcmp.lt.s32.totalorder %v282, 3
    %vm304 = vcmp.lt.s32.totalorder %v282, 4
    %v305 = vsel %vm301, %v285, %v288
    %v306 = vsel %vm304, %v294, 2102212464
    %v307 = vsel %vm303, %v291, %v306
    %v308 = vsel %vm302, %v305, %v307
    %v309 = vsel %vm301, %v288, %v291
    %v310 = vsel %vm304, %v297, 920167782
    %v311 = vsel %vm303, %v294, %v310
    %v312 = vsel %vm302, %v309, %v311
    %v313 = vsel %vm301, %v291, %v294
    %v314 = vsel %vm304, %v300, 1326507024
    %v315 = vsel %vm303, %v297, %v314
    %v316 = vsel %vm302, %v313, %v315
    %v317 = vshll.u32 %v277, 8
    %v318 = vmul.u32.u64.compose %v317, %v316
    %v319 = vextract.low.u32 %v318
    %v320 = vextract.high.u32 %v318
    %v321 = vmul.u32.u64.compose %v317, %v312
    %v322 = vextract.low.u32 %v321
    %v323 = vextract.high.u32 %v321
    %v324 = vmul.u32 %v317, %v308
    %v325 = vadd.s32 %v320, %v322
    %vm326 = vc.u32 %v320, %v322
    %v327 = vadd.s32 %v323, 1
    %v328 = vsel %vm326, %v327, %v323
    %v329 = vadd.s32 %v324, %v328
    %v330 = vadd.s32 %v329, 536870912
    %v331 = vshrl.u32 %v330, 30
    %v332 = vshll.u32 %v331, 30
    %v333 = vsub.s32 %v329, %v332
    %vm334 = vcmp.lt.s32.totalorder %v333, 0
    %v335 = vsub.s32 0, %v333
    %v336 = vsel %vm334, %v335, %v333
    %v337 = vclz %v336
    %v338 = vsub.s32 %v337, 2
    %vm339 = vcmp.gt.s32.totalorder 0, %v338
    %v340 = vsel %vm339, 0, %v338
    %v341 = vsub.s32 32, %v340
    %v342 = vshll.u32 %v333, %v340
    %v343 = vshrl.u32 %v325, %v341
    %v344 = vor.u32 %v342, %v343
    %v345 = vsub.s32 4294967266, %v340
    %v346 = vadd.s32 %v345, 127
    %v347 = vshll.u32 %v346, 23
    %v348 = vor.u32 4788187, %v347
    %v349 = vand.u32 2147483647, %v348
    %v351 = vcvt.s32.f32 %v344
    %v352 = vmul.f32 %v351, %v349
    %v353 = vxor.u32 %v352, 2147483648
    %v354 = vsel %vm271, %v353, %v352
    %v355 = vsub.s32 4, %v331
    %v356 = vsel %vm271, %v355, %v331
    %v357 = vsel %vm270, %v153, %v354
    %v358 = vsel %vm270, 0, %v356
    %v359 = vcosq.f32.pop %v357
    %v360 = vsinq.f32.pop %v357
    %vm361 = vweird.f32 %v153
    %v362 = vand.u32 %v358, 3
    %vm363 = vcmp.lt.s32.totalorder %v362, 2
    %vm364 = vcmp.eq.s32.totalorder %v362, 0
    %v365 = vxor.u32 %v360, 2147483648
    %v366 = vsel %vm364, %v359, %v365
    %vm367 = vcmp.eq.s32.totalorder %v362, 2
    %v368 = vxor.u32 %v359, 2147483648
    %v369 = vsel %vm367, %v368, %v360
    %v370 = vsel %vm363, %v366, %v369
    %v371 = vsel %vm361, nan, %v370
    %v372 = vand.u32 2147483647, %v158
    %vm373 = vcmp.le.f32.partialorder %v372, 0.7853982
    %vm374 = vcmp.lt.s32.totalorder %v158, 0
    %v375 = vand.u32 %v158, 2139095040
    %v376 = vshrl.u32 %v375, 23
    %v377 = vsub.s32 %v376, 127
    %v378 = vand.u32 2147483647, %v158
    %v379 = vand.u32 %v378, 8388607
    %v380 = vor.u32 %v379, 8388608
    %v381 = vsub.s32 0, %v380
    %v382 = vadd.s32 %v377, 1
    %vm383 = vcmp.gt.s32.totalorder %v382, 0
    %v384 = vsel %vm383, %v382, 0
    %v385 = vshrl.u32 %v384, 5
    %v386 = vand.u32 %v384, 31
    %v387 = vsub.s32 32, %v386
    %v388 = vshrl.u32 683565275, %v387
    %v389 = vshll.u32 683565275, %v386
    %v390 = vshrl.u32 2475754826, %v387
    %v391 = vor.u32 %v389, %v390
    %v392 = vshll.u32 2475754826, %v386
    %v393 = vshrl.u32 2131351028, %v387
    %v394 = vor.u32 %v392, %v393
    %v395 = vshll.u32 2131351028, %v386
    %v396 = vshrl.u32 2102212464, %v387
    %v397 = vor.u32 %v395, %v396
    %v398 = vshll.u32 2102212464, %v386
    %v399 = vshrl.u32 920167782, %v387
    %v400 = vor.u32 %v398, %v399
    %v401 = vshll.u32 920167782, %v386
    %v402 = vshrl.u32 1326507024, %v387
    %v403 = vor.u32 %v401, %v402
    %vm404 = vcmp.lt.s32.totalorder %v385, 1
    %vm405 = vcmp.lt.s32.totalorder %v385, 2
    %vm406 = vcmp.lt.s32.totalorder %v385, 3
    %vm407 = vcmp.lt.s32.totalorder %v385, 4
    %v408 = vsel %vm404, %v388, %v391
    %v409 = vsel %vm407, %v397, 2102212464
    %v410 = vsel %vm406, %v394, %v409
    %v411 = vsel %vm405, %v408, %v410
    %v412 = vsel %vm404, %v391, %v394
    %v413 = vsel %vm407, %v400, 920167782
    %v414 = vsel %vm406, %v397, %v413
    %v415 = vsel %vm405, %v412, %v414
    %v416 = vsel %vm404, %v394, %v397
    %v417 = vsel %vm407, %v403, 1326507024
    %v418 = vsel %vm406, %v400, %v417
    %v419 = vsel %vm405, %v416, %v418
    %v420 = vshll.u32 %v380, 8
    %v421 = vmul.u32.u64.compose %v420, %v419
    %v422 = vextract.low.u32 %v421
    %v423 = vextract.high.u32 %v421
    %v424 = vmul.u32.u64.compose %v420, %v415
    %v425 = vextract.low.u32 %v424
    %v426 = vextract.high.u32 %v424
    %v427 = vmul.u32 %v420, %v411
    %v428 = vadd.s32 %v423, %v425
    %vm429 = vc.u32 %v423, %v425
    %v430 = vadd.s32 %v426, 1
    %v431 = vsel %vm429, %v430, %v426
    %v432 = vadd.s32 %v427, %v431
    %v433 = vadd.s32 %v432, 536870912
    %v434 = vshrl.u32 %v433, 30
    %v435 = vshll.u32 %v434, 30
    %v436 = vsub.s32 %v432, %v435
    %vm437 = vcmp.lt.s32.totalorder %v436, 0
    %v438 = vsub.s32 0, %v436
    %v439 = vsel %vm437, %v438, %v436
    %v440 = vclz %v439
    %v441 = vsub.s32 %v440, 2
    %vm442 = vcmp.gt.s32.totalorder 0, %v441
    %v443 = vsel %vm442, 0, %v441
    %v444 = vsub.s32 32, %v443
    %v445 = vshll.u32 %v436, %v443
    %v446 = vshrl.u32 %v428, %v444
    %v447 = vor.u32 %v445, %v446
    %v448 = vsub.s32 4294967266, %v443
    %v449 = vadd.s32 %v448, 127
    %v450 = vshll.u32 %v449, 23
    %v451 = vor.u32 4788187, %v450
    %v452 = vand.u32 2147483647, %v451
    %v454 = vcvt.s32.f32 %v447
    %v455 = vmul.f32 %v454, %v452
    %v456 = vxor.u32 %v455, 2147483648
    %v457 = vsel %vm374, %v456, %v455
    %v458 = vsub.s32 4, %v434
    %v459 = vsel %vm374, %v458, %v434
    %v460 = vsel %vm373, %v158, %v457
    %v461 = vsel %vm373, 0, %v459
    %v462 = vcosq.f32.pop %v460
    %v463 = vsinq.f32.pop %v460
    %vm464 = vweird.f32 %v158
    %v465 = vand.u32 %v461, 3
    %vm466 = vcmp.lt.s32.totalorder %v465, 2
    %vm467 = vcmp.eq.s32.totalorder %v465, 0
    %v468 = vxor.u32 %v463, 2147483648
    %v469 = vsel %vm467, %v462, %v468
    %vm470 = vcmp.eq.s32.totalorder %v465, 2
    %v471 = vxor.u32 %v462, 2147483648
    %v472 = vsel %vm470, %v471, %v463
    %v473 = vsel %vm466, %v469, %v472
    %v474 = vsel %vm464, nan, %v473
    %v475 = vand.u32 2147483647, %v163
    %vm476 = vcmp.le.f32.partialorder %v475, 0.7853982
    %vm477 = vcmp.lt.s32.totalorder %v163, 0
    %v478 = vand.u32 %v163, 2139095040
    %v479 = vshrl.u32 %v478, 23
    %v480 = vsub.s32 %v479, 127
    %v481 = vand.u32 2147483647, %v163
    %v482 = vand.u32 %v481, 8388607
    %v483 = vor.u32 %v482, 8388608
    %v484 = vsub.s32 0, %v483
    %v485 = vadd.s32 %v480, 1
    %vm486 = vcmp.gt.s32.totalorder %v485, 0
    %v487 = vsel %vm486, %v485, 0
    %v488 = vshrl.u32 %v487, 5
    %v489 = vand.u32 %v487, 31
    %v490 = vsub.s32 32, %v489
    %v491 = vshrl.u32 683565275, %v490
    %v492 = vshll.u32 683565275, %v489
    %v493 = vshrl.u32 2475754826, %v490
    %v494 = vor.u32 %v492, %v493
    %v495 = vshll.u32 2475754826, %v489
    %v496 = vshrl.u32 2131351028, %v490
    %v497 = vor.u32 %v495, %v496
    %v498 = vshll.u32 2131351028, %v489
    %v499 = vshrl.u32 2102212464, %v490
    %v500 = vor.u32 %v498, %v499
    %v501 = vshll.u32 2102212464, %v489
    %v502 = vshrl.u32 920167782, %v490
    %v503 = vor.u32 %v501, %v502
    %v504 = vshll.u32 920167782, %v489
    %v505 = vshrl.u32 1326507024, %v490
    %v506 = vor.u32 %v504, %v505
    %vm507 = vcmp.lt.s32.totalorder %v488, 1
    %vm508 = vcmp.lt.s32.totalorder %v488, 2
    %vm509 = vcmp.lt.s32.totalorder %v488, 3
    %vm510 = vcmp.lt.s32.totalorder %v488, 4
    %v511 = vsel %vm507, %v491, %v494
    %v512 = vsel %vm510, %v500, 2102212464
    %v513 = vsel %vm509, %v497, %v512
    %v514 = vsel %vm508, %v511, %v513
    %v515 = vsel %vm507, %v494, %v497
    %v516 = vsel %vm510, %v503, 920167782
    %v517 = vsel %vm509, %v500, %v516
    %v518 = vsel %vm508, %v515, %v517
    %v519 = vsel %vm507, %v497, %v500
    %v520 = vsel %vm510, %v506, 1326507024
    %v521 = vsel %vm509, %v503, %v520
    %v522 = vsel %vm508, %v519, %v521
    %v523 = vshll.u32 %v483, 8
    %v524 = vmul.u32.u64.compose %v523, %v522
    %v525 = vextract.low.u32 %v524
    %v526 = vextract.high.u32 %v524
    %v527 = vmul.u32.u64.compose %v523, %v518
    %v528 = vextract.low.u32 %v527
    %v529 = vextract.high.u32 %v527
    %v530 = vmul.u32 %v523, %v514
    %v531 = vadd.s32 %v526, %v528
    %vm532 = vc.u32 %v526, %v528
    %v533 = vadd.s32 %v529, 1
    %v534 = vsel %vm532, %v533, %v529
    %v535 = vadd.s32 %v530, %v534
    %v536 = vadd.s32 %v535, 536870912
    %v537 = vshrl.u32 %v536, 30
    %v538 = vshll.u32 %v537, 30
    %v539 = vsub.s32 %v535, %v538
    %vm540 = vcmp.lt.s32.totalorder %v539, 0
    %v541 = vsub.s32 0, %v539
    %v542 = vsel %vm540, %v541, %v539
    %v543 = vclz %v542
    %v544 = vsub.s32 %v543, 2
    %vm545 = vcmp.gt.s32.totalorder 0, %v544
    %v546 = vsel %vm545, 0, %v544
    %v547 = vsub.s32 32, %v546
    %v548 = vshll.u32 %v539, %v546
    %v549 = vshrl.u32 %v531, %v547
    %v550 = vor.u32 %v548, %v549
    %v551 = vsub.s32 4294967266, %v546
    %v552 = vadd.s32 %v551, 127
    %v553 = vshll.u32 %v552, 23
    %v554 = vor.u32 4788187, %v553
    %v555 = vand.u32 2147483647, %v554
    %v557 = vcvt.s32.f32 %v550
    %v558 = vmul.f32 %v557, %v555
    %v559 = vxor.u32 %v558, 2147483648
    %v560 = vsel %vm477, %v559, %v558
    %v561 = vsub.s32 4, %v537
    %v562 = vsel %vm477, %v561, %v537
    %v563 = vsel %vm476, %v163, %v560
    %v564 = vsel %vm476, 0, %v562
    %v565 = vcosq.f32.pop %v563
    %v566 = vsinq.f32.pop %v563
    %vm567 = vweird.f32 %v163
    %v568 = vand.u32 %v564, 3
    %vm569 = vcmp.lt.s32.totalorder %v568, 2
    %vm570 = vcmp.eq.s32.totalorder %v568, 0
    %v571 = vxor.u32 %v566, 2147483648
    %v572 = vsel %vm570, %v565, %v571
    %vm573 = vcmp.eq.s32.totalorder %v568, 2
    %v574 = vxor.u32 %v565, 2147483648
    %v575 = vsel %vm573, %v574, %v566
    %v576 = vsel %vm569, %v572, %v575
    %v577 = vsel %vm567, nan, %v576
    %v578 = vld [vmem:[%s2] sm:$0xff]
    %v579 = vld [vmem:[%s3] sm:$0xff]
    %581 = vset.pattern.permute.xlu0 0
    %582 = vperm.xlu0 %581, %v579
    %v583 = vpop.permute.xlu0 %582
    %vm585 = vcmask 261120
    %v587 = vsel %vm585, %v578, 0
    %589 = vmatprep.subr.mxu0 0.0
    %590 = vmatpush1.msra.mxu0 0.0
    %591 = vmatprep.subr.mxu0 0.0
    %592 = vmatpush1.msra.mxu0 0.0
    %593 = vmatprep.subr.mxu0 0.0
    %594 = vmatpush1.msra.mxu0 0.0
    %595 = vmatprep.subr.mxu0 0.0
    %596 = vmatpush1.msra.mxu0 0.0
    %597 = vmatprep.subr.mxu0 0.0
    %598 = vmatpush1.msra.mxu0 0.0
    %599 = vmatprep.subr.mxu0 0.0
    %600 = vmatpush1.msra.mxu0 0.0
    %601 = vmatprep.subr.mxu0 0.0
    %602 = vmatpush1.msra.mxu0 0.0
    %603 = vmatprep.subr.mxu0 0.0
    %604 = vmatpush1.msra.mxu0 0.0
    %605 = vmatprep.subr.mxu0 0.0
    %606 = vmatpush1.msra.mxu0 0.0
    %607 = vmatprep.subr.mxu0 0.0
    %608 = vmatpush1.msra.mxu0 0.0
    %609 = vmatprep.subr.mxu0 0.0
    %610 = vmatpush1.msra.mxu0 0.0
    %611 = vmatprep.subr.mxu0 0.0
    %612 = vmatpush1.msra.mxu0 0.0
    %613 = vmatprep.subr.mxu0 0.0
    %614 = vmatpush1.msra.mxu0 %v577
    %615 = vmatprep.subr.mxu0 0.0
    %616 = vmatpush1.msra.mxu0 %v474
    %617 = vmatprep.subr.mxu0 0.0
    %618 = vmatpush1.msra.mxu0 %v371
    %619 = vmatprep.subr.mxu0 0.0
    %620 = vmatpush1.msra.mxu0 %v268
    %621 = vmatprep.subr.mxu0 0.0
    %622 = vmatpush2.msra.mxu0 0.0
    %623 = vmatprep.subr.mxu0 0.0
    %624 = vmatpush2.msra.mxu0 0.0
    %625 = vmatprep.subr.mxu0 0.0
    %626 = vmatpush2.msra.mxu0 0.0
    %627 = vmatprep.subr.mxu0 0.0
    %628 = vmatpush2.msra.mxu0 0.0
    %629 = vmatprep.subr.mxu0 0.0
    %630 = vmatpush2.msra.mxu0 0.0
    %631 = vmatprep.subr.mxu0 0.0
    %632 = vmatpush2.msra.mxu0 0.0
    %633 = vmatprep.subr.mxu0 0.0
    %634 = vmatpush2.msra.mxu0 0.0
    %635 = vmatprep.subr.mxu0 0.0
    %636 = vmatpush2.msra.mxu0 0.0
    %637 = vmatprep.subr.mxu0 0.0
    %638 = vmatpush2.msra.mxu0 0.0
    %639 = vmatprep.subr.mxu0 0.0
    %640 = vmatpush2.msra.mxu0 0.0
    %641 = vmatprep.subr.mxu0 0.0
    %642 = vmatpush2.msra.mxu0 0.0
    %643 = vmatprep.subr.mxu0 0.0
    %644 = vmatpush2.msra.mxu0 0.0
    %645 = vmatprep.subr.mxu0 0.0
    %646 = vmatpush2.msra.mxu0 0.0
    %647 = vmatprep.subr.mxu0 0.0
    %648 = vmatpush2.msra.mxu0 0.0
    %649 = vmatprep.subr.mxu0 0.0
    %650 = vmatpush2.msra.mxu0 0.0
    %651 = vmatprep.subr.mxu0 0.0
    %652 = vmatpush2.msra.mxu0 0.0
    %653 = vmatprep.mubr.f32.mxu0 0.0
    %654 = vmatmul.mubr.f32.gmra.mxu0 %v587
    %v655 = vpop.f32.mrf.mxu0
    %v656 = vadd.f32 %v583, %v655
    %v657 = vpop.f32.mrf.mxu0
    %658 = vdwg.mxu0
    %v659 = vld [vmem:[%s4] sm:$0xff]
    %v660 = vld [vmem:[%s4 + $0x8] sm:$0xff]
    %v661 = vld [vmem:[%s4 + $0x10] sm:$0xff]
    %v662 = vld [vmem:[%s4 + $0x18] sm:$0xff]
    %v663 = vld [vmem:[%s4 + $0x20] sm:$0xff]
    %v664 = vld [vmem:[%s4 + $0x28] sm:$0xff]
    %v665 = vld [vmem:[%s4 + $0x30] sm:$0x3]
    %v666 = vld [vmem:[%s5] sm:$0xff]
    %v667 = vld [vmem:[%s5 + $0x8] sm:$0xff]
    %v668 = vld [vmem:[%s5 + $0x10] sm:$0xff]
    %v669 = vld [vmem:[%s5 + $0x18] sm:$0xff]
    %v670 = vld [vmem:[%s5 + $0x20] sm:$0xff]
    %v671 = vld [vmem:[%s5 + $0x28] sm:$0xff]
    %v672 = vld [vmem:[%s5 + $0x30] sm:$0x3]
    %674 = vset.pattern.permute.xlu0 0
    %675 = vperm.xlu0 %674, %v666
    %v676 = vpop.permute.xlu0 %675
    %679 = vset.pattern.permute.xlu0 0
    %680 = vperm.xlu0 %679, %v667
    %v681 = vpop.permute.xlu0 %680
    %684 = vset.pattern.permute.xlu0 0
    %685 = vperm.xlu0 %684, %v668
    %v686 = vpop.permute.xlu0 %685
    %689 = vset.pattern.permute.xlu0 0
    %690 = vperm.xlu0 %689, %v669
    %v691 = vpop.permute.xlu0 %690
    %694 = vset.pattern.permute.xlu0 0
    %695 = vperm.xlu0 %694, %v670
    %v696 = vpop.permute.xlu0 %695
    %699 = vset.pattern.permute.xlu0 0
    %700 = vperm.xlu0 %699, %v671
    %v701 = vpop.permute.xlu0 %700
    %704 = vset.pattern.permute.xlu0 0
    %705 = vperm.xlu0 %704, %v672
    %v706 = vpop.permute.xlu0 %705
    %vm708 = vcmask 64512
    %v710 = vsel %vm708, %v659, 0
    %v713 = vsel %vm708, %v660, 0
    %v716 = vsel %vm708, %v661, 0
    %v719 = vsel %vm708, %v662, 0
    %v722 = vsel %vm708, %v663, 0
    %v725 = vsel %vm708, %v664, 0
    %v728 = vsel %vm708, %v665, 0
    %730 = vmatprep.subr.mxu0 0.0
    %731 = vmatpush1.msra.mxu0 0.0
    %732 = vmatprep.subr.mxu0 0.0
    %733 = vmatpush1.msra.mxu0 0.0
    %734 = vmatprep.subr.mxu0 0.0
    %735 = vmatpush1.msra.mxu0 0.0
    %736 = vmatprep.subr.mxu0 0.0
    %737 = vmatpush1.msra.mxu0 0.0
    %738 = vmatprep.subr.mxu0 0.0
    %739 = vmatpush1.msra.mxu0 0.0
    %740 = vmatprep.subr.mxu0 0.0
    %741 = vmatpush1.msra.mxu0 0.0
    %742 = vmatprep.subr.mxu0 0.0
    %743 = vmatpush1.msra.mxu0 0.0
    %744 = vmatprep.subr.mxu0 0.0
    %745 = vmatpush1.msra.mxu0 0.0
    %746 = vmatprep.subr.mxu0 0.0
    %747 = vmatpush1.msra.mxu0 0.0
    %748 = vmatprep.subr.mxu0 0.0
    %749 = vmatpush1.msra.mxu0 0.0
    %750 = vmatprep.subr.mxu0 0.0
    %751 = vmatpush1.msra.mxu0 0.0
    %752 = vmatprep.subr.mxu0 0.0
    %753 = vmatpush1.msra.mxu0 0.0
    %754 = vmatprep.subr.mxu0 0.0
    %755 = vmatpush1.msra.mxu0 0.0
    %756 = vmatprep.subr.mxu0 0.0
    %757 = vmatpush1.msra.mxu0 0.0
    %758 = vmatprep.subr.mxu0 0.0
    %759 = vmatpush1.msra.mxu0 0.0
    %760 = vmatprep.subr.mxu0 0.0
    %761 = vmatpush1.msra.mxu0 %v656
    %762 = vmatprep.subr.mxu0 0.0
    %763 = vmatpush2.msra.mxu0 0.0
    %764 = vmatprep.subr.mxu0 0.0
    %765 = vmatpush2.msra.mxu0 0.0
    %766 = vmatprep.subr.mxu0 0.0
    %767 = vmatpush2.msra.mxu0 0.0
    %768 = vmatprep.subr.mxu0 0.0
    %769 = vmatpush2.msra.mxu0 0.0
    %770 = vmatprep.subr.mxu0 0.0
    %771 = vmatpush2.msra.mxu0 0.0
    %772 = vmatprep.subr.mxu0 0.0
    %773 = vmatpush2.msra.mxu0 0.0
    %774 = vmatprep.subr.mxu0 0.0
    %775 = vmatpush2.msra.mxu0 0.0
    %776 = vmatprep.subr.mxu0 0.0
    %777 = vmatpush2.msra.mxu0 0.0
    %778 = vmatprep.subr.mxu0 0.0
    %779 = vmatpush2.msra.mxu0 0.0
    %780 = vmatprep.subr.mxu0 0.0
    %781 = vmatpush2.msra.mxu0 0.0
    %782 = vmatprep.subr.mxu0 0.0
    %783 = vmatpush2.msra.mxu0 0.0
    %784 = vmatprep.subr.mxu0 0.0
    %785 = vmatpush2.msra.mxu0 0.0
    %786 = vmatprep.subr.mxu0 0.0
    %787 = vmatpush2.msra.mxu0 0.0
    %788 = vmatprep.subr.mxu0 0.0
    %789 = vmatpush2.msra.mxu0 0.0
    %790 = vmatprep.subr.mxu0 0.0
    %791 = vmatpush2.msra.mxu0 0.0
    %792 = vmatprep.subr.mxu0 0.0
    %793 = vmatpush2.msra.mxu0 0.0
    %794 = vmatprep.mubr.f32.mxu0 0.0
    %795 = vmatmul.mubr.f32.gmra.mxu0 %v710
    %v796 = vpop.f32.mrf.mxu0
    %v797 = vadd.f32 %v676, %v796
    %v798 = vpop.f32.mrf.mxu0
    %799 = vmatprep.mubr.f32.mxu0 0.0
    %800 = vmatmul.mubr.f32.gmra.mxu0 %v713
    %v801 = vpop.f32.mrf.mxu0
    %v802 = vadd.f32 %v681, %v801
    %v803 = vpop.f32.mrf.mxu0
    %804 = vmatprep.mubr.f32.mxu0 0.0
    %805 = vmatmul.mubr.f32.gmra.mxu0 %v716
    %v806 = vpop.f32.mrf.mxu0
    %v807 = vadd.f32 %v686, %v806
    %v808 = vpop.f32.mrf.mxu0
    %809 = vmatprep.mubr.f32.mxu0 0.0
    %810 = vmatmul.mubr.f32.gmra.mxu0 %v719
    %v811 = vpop.f32.mrf.mxu0
    %v812 = vadd.f32 %v691, %v811
    %v813 = vpop.f32.mrf.mxu0
    %814 = vmatprep.mubr.f32.mxu0 0.0
    %815 = vmatmul.mubr.f32.gmra.mxu0 %v722
    %v816 = vpop.f32.mrf.mxu0
    %v817 = vadd.f32 %v696, %v816
    %v818 = vpop.f32.mrf.mxu0
    %819 = vmatprep.mubr.f32.mxu0 0.0
    %820 = vmatmul.mubr.f32.gmra.mxu0 %v725
    %v821 = vpop.f32.mrf.mxu0
    %v822 = vadd.f32 %v701, %v821
    %v823 = vpop.f32.mrf.mxu0
    %824 = vmatprep.mubr.f32.mxu0 0.0
    %825 = vmatmul.mubr.f32.gmra.mxu0 %v728
    %v826 = vpop.f32.mrf.mxu0
    %v827 = vadd.f32 %v706, %v826
    %v828 = vpop.f32.mrf.mxu0
    %829 = vdwg.mxu0
    %v830 = vmax.f32 %v797, 0.0
    %v831 = vmax.f32 %v802, 0.0
    %v832 = vmax.f32 %v807, 0.0
    %v833 = vmax.f32 %v812, 0.0
    %v834 = vmax.f32 %v817, 0.0
    %v835 = vmax.f32 %v822, 0.0
    %v836 = vmax.f32 %v827, 0.0
    %v837 = vld [vmem:[%s6] sm:$0xff]
    %v838 = vld [vmem:[%s6 + $0x8] sm:$0xff]
    %v839 = vld [vmem:[%s6 + $0x10] sm:$0xff]
    %v840 = vld [vmem:[%s6 + $0x18] sm:$0x1]
    %v841 = vld [vmem:[%s7] sm:$0xff]
    %v842 = vld [vmem:[%s7 + $0x8] sm:$0xff]
    %v843 = vld [vmem:[%s7 + $0x10] sm:$0xff]
    %v844 = vld [vmem:[%s7 + $0x18] sm:$0x1]
    %846 = vset.pattern.permute.xlu0 0
    %847 = vperm.xlu0 %846, %v841
    %v848 = vpop.permute.xlu0 %847
    %851 = vset.pattern.permute.xlu0 0
    %852 = vperm.xlu0 %851, %v842
    %v853 = vpop.permute.xlu0 %852
    %856 = vset.pattern.permute.xlu0 0
    %857 = vperm.xlu0 %856, %v843
    %v858 = vpop.permute.xlu0 %857
    %861 = vset.pattern.permute.xlu0 0
    %862 = vperm.xlu0 %861, %v844
    %v863 = vpop.permute.xlu0 %862
    %vm865 = vcmask 408576
    %v867 = vsel %vm865, %v837, 0
    %v870 = vsel %vm865, %v838, 0
    %v873 = vsel %vm865, %v839, 0
    %v876 = vsel %vm865, %v840, 0
    %vm878 = vcmask 1041408
    %v880 = vsel %vm878, %v836, 0
    %882 = vmatprep.subr.mxu0 0.0
    %883 = vmatpush1.msra.mxu0 0.0
    %884 = vmatprep.subr.mxu0 0.0
    %885 = vmatpush1.msra.mxu0 0.0
    %886 = vmatprep.subr.mxu0 0.0
    %887 = vmatpush1.msra.mxu0 0.0
    %888 = vmatprep.subr.mxu0 0.0
    %889 = vmatpush1.msra.mxu0 0.0
    %890 = vmatprep.subr.mxu0 0.0
    %891 = vmatpush1.msra.mxu0 0.0
    %892 = vmatprep.subr.mxu0 0.0
    %893 = vmatpush1.msra.mxu0 0.0
    %894 = vmatprep.subr.mxu0 0.0
    %895 = vmatpush1.msra.mxu0 0.0
    %896 = vmatprep.subr.mxu0 0.0
    %897 = vmatpush1.msra.mxu0 0.0
    %898 = vmatprep.subr.mxu0 0.0
    %899 = vmatpush1.msra.mxu0 0.0
    %900 = vmatprep.subr.mxu0 0.0
    %901 = vmatpush1.msra.mxu0 %v880
    %902 = vmatprep.subr.mxu0 0.0
    %903 = vmatpush1.msra.mxu0 %v835
    %904 = vmatprep.subr.mxu0 0.0
    %905 = vmatpush1.msra.mxu0 %v834
    %906 = vmatprep.subr.mxu0 0.0
    %907 = vmatpush1.msra.mxu0 %v833
    %908 = vmatprep.subr.mxu0 0.0
    %909 = vmatpush1.msra.mxu0 %v832
    %910 = vmatprep.subr.mxu0 0.0
    %911 = vmatpush1.msra.mxu0 %v831
    %912 = vmatprep.subr.mxu0 0.0
    %913 = vmatpush1.msra.mxu0 %v830
    %914 = vmatprep.subr.mxu0 0.0
    %915 = vmatpush2.msra.mxu0 0.0
    %916 = vmatprep.subr.mxu0 0.0
    %917 = vmatpush2.msra.mxu0 0.0
    %918 = vmatprep.subr.mxu0 0.0
    %919 = vmatpush2.msra.mxu0 0.0
    %920 = vmatprep.subr.mxu0 0.0
    %921 = vmatpush2.msra.mxu0 0.0
    %922 = vmatprep.subr.mxu0 0.0
    %923 = vmatpush2.msra.mxu0 0.0
    %924 = vmatprep.subr.mxu0 0.0
    %925 = vmatpush2.msra.mxu0 0.0
    %926 = vmatprep.subr.mxu0 0.0
    %927 = vmatpush2.msra.mxu0 0.0
    %928 = vmatprep.subr.mxu0 0.0
    %929 = vmatpush2.msra.mxu0 0.0
    %930 = vmatprep.subr.mxu0 0.0
    %931 = vmatpush2.msra.mxu0 0.0
    %932 = vmatprep.subr.mxu0 0.0
    %933 = vmatpush2.msra.mxu0 0.0
    %934 = vmatprep.subr.mxu0 0.0
    %935 = vmatpush2.msra.mxu0 0.0
    %936 = vmatprep.subr.mxu0 0.0
    %937 = vmatpush2.msra.mxu0 0.0
    %938 = vmatprep.subr.mxu0 0.0
    %939 = vmatpush2.msra.mxu0 0.0
    %940 = vmatprep.subr.mxu0 0.0
    %941 = vmatpush2.msra.mxu0 0.0
    %942 = vmatprep.subr.mxu0 0.0
    %943 = vmatpush2.msra.mxu0 0.0
    %944 = vmatprep.subr.mxu0 0.0
    %945 = vmatpush2.msra.mxu0 0.0
    %946 = vmatprep.mubr.f32.mxu0 0.0
    %947 = vmatmul.mubr.f32.gmra.mxu0 %v867
    %v948 = vpop.f32.mrf.mxu0
    %v949 = vadd.f32 %v848, %v948
    %v950 = vpop.f32.mrf.mxu0
    %951 = vmatprep.mubr.f32.mxu0 0.0
    %952 = vmatmul.mubr.f32.gmra.mxu0 %v870
    %v953 = vpop.f32.mrf.mxu0
    %v954 = vadd.f32 %v853, %v953
    %v955 = vpop.f32.mrf.mxu0
    %956 = vmatprep.mubr.f32.mxu0 0.0
    %957 = vmatmul.mubr.f32.gmra.mxu0 %v873
    %v958 = vpop.f32.mrf.mxu0
    %v959 = vadd.f32 %v858, %v958
    %v960 = vpop.f32.mrf.mxu0
    %961 = vmatprep.mubr.f32.mxu0 0.0
    %962 = vmatmul.mubr.f32.gmra.mxu0 %v876
    %v963 = vpop.f32.mrf.mxu0
    %v964 = vadd.f32 %v863, %v963
    %v965 = vpop.f32.mrf.mxu0
    %966 = vdwg.mxu0
    %v967 = vmax.f32 %v949, 0.0
    %v968 = vmax.f32 %v954, 0.0
    %v969 = vmax.f32 %v959, 0.0
    %v970 = vmax.f32 %v964, 0.0
    %v971 = vld [vmem:[%s8] sm:$0xff]
    %v972 = vld [vmem:[%s8 + $0x8] sm:$0xff]
    %v973 = vld [vmem:[%s8 + $0x10] sm:$0xff]
    %v974 = vld [vmem:[%s8 + $0x18] sm:$0xff]
    %v975 = vld [vmem:[%s8 + $0x20] sm:$0xff]
    %v976 = vld [vmem:[%s9] sm:$0xff]
    %v977 = vld [vmem:[%s9 + $0x8] sm:$0xff]
    %v978 = vld [vmem:[%s9 + $0x10] sm:$0xff]
    %v979 = vld [vmem:[%s9 + $0x18] sm:$0xff]
    %v980 = vld [vmem:[%s9 + $0x20] sm:$0xff]
    %982 = vset.pattern.permute.xlu0 0
    %983 = vperm.xlu0 %982, %v976
    %v984 = vpop.permute.xlu0 %983
    %987 = vset.pattern.permute.xlu0 0
    %988 = vperm.xlu0 %987, %v977
    %v989 = vpop.permute.xlu0 %988
    %992 = vset.pattern.permute.xlu0 0
    %993 = vperm.xlu0 %992, %v978
    %v994 = vpop.permute.xlu0 %993
    %997 = vset.pattern.permute.xlu0 0
    %998 = vperm.xlu0 %997, %v979
    %v999 = vpop.permute.xlu0 %998
    %1002 = vset.pattern.permute.xlu0 0
    %1003 = vperm.xlu0 %1002, %v980
    %v1004 = vpop.permute.xlu0 %1003
    %vm1006 = vcmask 203776
    %v1008 = vsel %vm1006, %v971, 0
    %v1011 = vsel %vm1006, %v972, 0
    %v1014 = vsel %vm1006, %v973, 0
    %v1017 = vsel %vm1006, %v974, 0
    %v1020 = vsel %vm1006, %v975, 0
    %vm1022 = vcmask 1040384
    %v1024 = vsel %vm1022, %v970, 0
    %1026 = vmatprep.subr.mxu0 0.0
    %1027 = vmatpush1.msra.mxu0 0.0
    %1028 = vmatprep.subr.mxu0 0.0
    %1029 = vmatpush1.msra.mxu0 0.0
    %1030 = vmatprep.subr.mxu0 0.0
    %1031 = vmatpush1.msra.mxu0 0.0
    %1032 = vmatprep.subr.mxu0 0.0
    %1033 = vmatpush1.msra.mxu0 0.0
    %1034 = vmatprep.subr.mxu0 0.0
    %1035 = vmatpush1.msra.mxu0 0.0
    %1036 = vmatprep.subr.mxu0 0.0
    %1037 = vmatpush1.msra.mxu0 0.0
    %1038 = vmatprep.subr.mxu0 0.0
    %1039 = vmatpush1.msra.mxu0 0.0
    %1040 = vmatprep.subr.mxu0 0.0
    %1041 = vmatpush1.msra.mxu0 0.0
    %1042 = vmatprep.subr.mxu0 0.0
    %1043 = vmatpush1.msra.mxu0 0.0
    %1044 = vmatprep.subr.mxu0 0.0
    %1045 = vmatpush1.msra.mxu0 0.0
    %1046 = vmatprep.subr.mxu0 0.0
    %1047 = vmatpush1.msra.mxu0 0.0
    %1048 = vmatprep.subr.mxu0 0.0
    %1049 = vmatpush1.msra.mxu0 0.0
    %1050 = vmatprep.subr.mxu0 0.0
    %1051 = vmatpush1.msra.mxu0 %v1024
    %1052 = vmatprep.subr.mxu0 0.0
    %1053 = vmatpush1.msra.mxu0 %v969
    %1054 = vmatprep.subr.mxu0 0.0
    %1055 = vmatpush1.msra.mxu0 %v968
    %1056 = vmatprep.subr.mxu0 0.0
    %1057 = vmatpush1.msra.mxu0 %v967
    %1058 = vmatprep.subr.mxu0 0.0
    %1059 = vmatpush2.msra.mxu0 0.0
    %1060 = vmatprep.subr.mxu0 0.0
    %1061 = vmatpush2.msra.mxu0 0.0
    %1062 = vmatprep.subr.mxu0 0.0
    %1063 = vmatpush2.msra.mxu0 0.0
    %1064 = vmatprep.subr.mxu0 0.0
    %1065 = vmatpush2.msra.mxu0 0.0
    %1066 = vmatprep.subr.mxu0 0.0
    %1067 = vmatpush2.msra.mxu0 0.0
    %1068 = vmatprep.subr.mxu0 0.0
    %1069 = vmatpush2.msra.mxu0 0.0
    %1070 = vmatprep.subr.mxu0 0.0
    %1071 = vmatpush2.msra.mxu0 0.0
    %1072 = vmatprep.subr.mxu0 0.0
    %1073 = vmatpush2.msra.mxu0 0.0
    %1074 = vmatprep.subr.mxu0 0.0
    %1075 = vmatpush2.msra.mxu0 0.0
    %1076 = vmatprep.subr.mxu0 0.0
    %1077 = vmatpush2.msra.mxu0 0.0
    %1078 = vmatprep.subr.mxu0 0.0
    %1079 = vmatpush2.msra.mxu0 0.0
    %1080 = vmatprep.subr.mxu0 0.0
    %1081 = vmatpush2.msra.mxu0 0.0
    %1082 = vmatprep.subr.mxu0 0.0
    %1083 = vmatpush2.msra.mxu0 0.0
    %1084 = vmatprep.subr.mxu0 0.0
    %1085 = vmatpush2.msra.mxu0 0.0
    %1086 = vmatprep.subr.mxu0 0.0
    %1087 = vmatpush2.msra.mxu0 0.0
    %1088 = vmatprep.subr.mxu0 0.0
    %1089 = vmatpush2.msra.mxu0 0.0
    %1090 = vmatprep.mubr.f32.mxu0 0.0
    %1091 = vmatmul.mubr.f32.gmra.mxu0 %v1008
    %v1092 = vpop.f32.mrf.mxu0
    %v1093 = vadd.f32 %v984, %v1092
    %v1094 = vpop.f32.mrf.mxu0
    %1095 = vmatprep.mubr.f32.mxu0 0.0
    %1096 = vmatmul.mubr.f32.gmra.mxu0 %v1011
    %v1097 = vpop.f32.mrf.mxu0
    %v1098 = vadd.f32 %v989, %v1097
    %v1099 = vpop.f32.mrf.mxu0
    %1100 = vmatprep.mubr.f32.mxu0 0.0
    %1101 = vmatmul.mubr.f32.gmra.mxu0 %v1014
    %v1102 = vpop.f32.mrf.mxu0
    %v1103 = vadd.f32 %v994, %v1102
    %v1104 = vpop.f32.mrf.mxu0
    %1105 = vmatprep.mubr.f32.mxu0 0.0
    %1106 = vmatmul.mubr.f32.gmra.mxu0 %v1017
    %v1107 = vpop.f32.mrf.mxu0
    %v1108 = vadd.f32 %v999, %v1107
    %v1109 = vpop.f32.mrf.mxu0
    %1110 = vmatprep.mubr.f32.mxu0 0.0
    %1111 = vmatmul.mubr.f32.gmra.mxu0 %v1020
    %v1112 = vpop.f32.mrf.mxu0
    %v1113 = vadd.f32 %v1004, %v1112
    %v1114 = vpop.f32.mrf.mxu0
    %1115 = vdwg.mxu0
    %v1116 = vld [vmem:[%s10] sm:$0xff]
    %v1117 = vld [vmem:[%s10 + $0x8] sm:$0xff]
    %v1118 = vld [vmem:[%s10 + $0x10] sm:$0xff]
    %v1119 = vld [vmem:[%s10 + $0x18] sm:$0xff]
    %v1120 = vld [vmem:[%s10 + $0x20] sm:$0xff]
    %vm1121 = vcmask 326656
    %v1123 = vsel %vm1121, %v1116, 0
    %v1126 = vsel %vm1121, %v1117, 0
    %v1129 = vsel %vm1121, %v1118, 0
    %v1132 = vsel %vm1121, %v1119, 0
    %v1135 = vsel %vm1121, %v1120, 0
    %1137 = vmatprep.subr.mxu0 0.0
    %1138 = vmatpush1.msra.mxu0 0.0
    %1139 = vmatprep.subr.mxu0 0.0
    %1140 = vmatpush1.msra.mxu0 0.0
    %1141 = vmatprep.subr.mxu0 0.0
    %1142 = vmatpush1.msra.mxu0 0.0
    %1143 = vmatprep.subr.mxu0 0.0
    %1144 = vmatpush1.msra.mxu0 0.0
    %1145 = vmatprep.subr.mxu0 0.0
    %1146 = vmatpush1.msra.mxu0 0.0
    %1147 = vmatprep.subr.mxu0 0.0
    %1148 = vmatpush1.msra.mxu0 0.0
    %1149 = vmatprep.subr.mxu0 0.0
    %1150 = vmatpush1.msra.mxu0 0.0
    %1151 = vmatprep.subr.mxu0 0.0
    %1152 = vmatpush1.msra.mxu0 0.0
    %1153 = vmatprep.subr.mxu0 0.0
    %1154 = vmatpush1.msra.mxu0 0.0
    %1155 = vmatprep.subr.mxu0 0.0
    %1156 = vmatpush1.msra.mxu0 0.0
    %1157 = vmatprep.subr.mxu0 0.0
    %1158 = vmatpush1.msra.mxu0 0.0
    %1159 = vmatprep.subr.mxu0 0.0
    %1160 = vmatpush1.msra.mxu0 %v1113
    %1161 = vmatprep.subr.mxu0 0.0
    %1162 = vmatpush1.msra.mxu0 %v1108
    %1163 = vmatprep.subr.mxu0 0.0
    %1164 = vmatpush1.msra.mxu0 %v1103
    %1165 = vmatprep.subr.mxu0 0.0
    %1166 = vmatpush1.msra.mxu0 %v1098
    %1167 = vmatprep.subr.mxu0 0.0
    %1168 = vmatpush1.msra.mxu0 %v1093
    %1169 = vmatprep.subr.mxu0 0.0
    %1170 = vmatpush2.msra.mxu0 0.0
    %1171 = vmatprep.subr.mxu0 0.0
    %1172 = vmatpush2.msra.mxu0 0.0
    %1173 = vmatprep.subr.mxu0 0.0
    %1174 = vmatpush2.msra.mxu0 0.0
    %1175 = vmatprep.subr.mxu0 0.0
    %1176 = vmatpush2.msra.mxu0 0.0
    %1177 = vmatprep.subr.mxu0 0.0
    %1178 = vmatpush2.msra.mxu0 0.0
    %1179 = vmatprep.subr.mxu0 0.0
    %1180 = vmatpush2.msra.mxu0 0.0
    %1181 = vmatprep.subr.mxu0 0.0
    %1182 = vmatpush2.msra.mxu0 0.0
    %1183 = vmatprep.subr.mxu0 0.0
    %1184 = vmatpush2.msra.mxu0 0.0
    %1185 = vmatprep.subr.mxu0 0.0
    %1186 = vmatpush2.msra.mxu0 0.0
    %1187 = vmatprep.subr.mxu0 0.0
    %1188 = vmatpush2.msra.mxu0 0.0
    %1189 = vmatprep.subr.mxu0 0.0
    %1190 = vmatpush2.msra.mxu0 0.0
    %1191 = vmatprep.subr.mxu0 0.0
    %1192 = vmatpush2.msra.mxu0 0.0
    %1193 = vmatprep.subr.mxu0 0.0
    %1194 = vmatpush2.msra.mxu0 0.0
    %1195 = vmatprep.subr.mxu0 0.0
    %1196 = vmatpush2.msra.mxu0 0.0
    %1197 = vmatprep.subr.mxu0 0.0
    %1198 = vmatpush2.msra.mxu0 0.0
    %1199 = vmatprep.subr.mxu0 0.0
    %1200 = vmatpush2.msra.mxu0 0.0
    %1201 = vmatprep.mubr.f32.mxu0 0.0
    %1202 = vmatmul.mubr.f32.gmra.mxu0 %v1123
    %v1203 = vpop.f32.mrf.mxu0
    %v1204 = vadd.f32 0.0, %v1203
    %v1205 = vpop.f32.mrf.mxu0
    %1206 = vmatprep.mubr.f32.mxu0 0.0
    %1207 = vmatmul.mubr.f32.gmra.mxu0 %v1126
    %v1208 = vpop.f32.mrf.mxu0
    %v1209 = vadd.f32 0.0, %v1208
    %v1210 = vpop.f32.mrf.mxu0
    %1211 = vmatprep.mubr.f32.mxu0 0.0
    %1212 = vmatmul.mubr.f32.gmra.mxu0 %v1129
    %v1213 = vpop.f32.mrf.mxu0
    %v1214 = vadd.f32 0.0, %v1213
    %v1215 = vpop.f32.mrf.mxu0
    %1216 = vmatprep.mubr.f32.mxu0 0.0
    %1217 = vmatmul.mubr.f32.gmra.mxu0 %v1132
    %v1218 = vpop.f32.mrf.mxu0
    %v1219 = vadd.f32 0.0, %v1218
    %v1220 = vpop.f32.mrf.mxu0
    %1221 = vmatprep.mubr.f32.mxu0 0.0
    %1222 = vmatmul.mubr.f32.gmra.mxu0 %v1135
    %v1223 = vpop.f32.mrf.mxu0
    %v1224 = vadd.f32 0.0, %v1223
    %v1225 = vpop.f32.mrf.mxu0
    %1226 = vdwg.mxu0
    %v1227 = vsub.f32 %v1093, %v1204
    %v1228 = vsub.f32 %v1098, %v1209
    %v1229 = vsub.f32 %v1103, %v1214
    %v1230 = vsub.f32 %v1108, %v1219
    %v1231 = vsub.f32 %v1113, %v1224
    %v1232 = vmul.f32 %v1227, %v1227
    %v1233 = vmul.f32 %v1228, %v1228
    %v1234 = vmul.f32 %v1229, %v1229
    %v1235 = vmul.f32 %v1230, %v1230
    %v1236 = vmul.f32 %v1231, %v1231
    %1237 = vmatprep.subr.mxu0 0.0
    %1238 = vmatpush1.msra.mxu0 0.0
    %1239 = vmatprep.subr.mxu0 0.0
    %1240 = vmatpush1.msra.mxu0 0.0
    %1241 = vmatprep.subr.mxu0 0.0
    %1242 = vmatpush1.msra.mxu0 0.0
    %1243 = vmatprep.subr.mxu0 0.0
    %1244 = vmatpush1.msra.mxu0 0.0
    %1245 = vmatprep.subr.mxu0 0.0
    %1246 = vmatpush1.msra.mxu0 0.0
    %1247 = vmatprep.subr.mxu0 0.0
    %1248 = vmatpush1.msra.mxu0 0.0
    %1249 = vmatprep.subr.mxu0 0.0
    %1250 = vmatpush1.msra.mxu0 0.0
    %1251 = vmatprep.subr.mxu0 0.0
    %1252 = vmatpush1.msra.mxu0 0.0
    %1253 = vmatprep.subr.mxu0 0.0
    %1254 = vmatpush1.msra.mxu0 0.0
    %1255 = vmatprep.subr.mxu0 0.0
    %1256 = vmatpush1.msra.mxu0 0.0
    %1257 = vmatprep.subr.mxu0 0.0
    %1258 = vmatpush1.msra.mxu0 0.0
    %1259 = vmatprep.subr.mxu0 0.0
    %1260 = vmatpush1.msra.mxu0 %v1236
    %1261 = vmatprep.subr.mxu0 0.0
    %1262 = vmatpush1.msra.mxu0 %v1235
    %1263 = vmatprep.subr.mxu0 0.0
    %1264 = vmatpush1.msra.mxu0 %v1234
    %1265 = vmatprep.subr.mxu0 0.0
    %1266 = vmatpush1.msra.mxu0 %v1233
    %1267 = vmatprep.subr.mxu0 0.0
    %1268 = vmatpush1.msra.mxu0 %v1232
    %1269 = vmatprep.subr.mxu0 0.0
    %1270 = vmatpush2.msra.mxu0 0.0
    %1271 = vmatprep.subr.mxu0 0.0
    %1272 = vmatpush2.msra.mxu0 0.0
    %1273 = vmatprep.subr.mxu0 0.0
    %1274 = vmatpush2.msra.mxu0 0.0
    %1275 = vmatprep.subr.mxu0 0.0
    %1276 = vmatpush2.msra.mxu0 0.0
    %1277 = vmatprep.subr.mxu0 0.0
    %1278 = vmatpush2.msra.mxu0 0.0
    %1279 = vmatprep.subr.mxu0 0.0
    %1280 = vmatpush2.msra.mxu0 0.0
    %1281 = vmatprep.subr.mxu0 0.0
    %1282 = vmatpush2.msra.mxu0 0.0
    %1283 = vmatprep.subr.mxu0 0.0
    %1284 = vmatpush2.msra.mxu0 0.0
    %1285 = vmatprep.subr.mxu0 0.0
    %1286 = vmatpush2.msra.mxu0 0.0
    %1287 = vmatprep.subr.mxu0 0.0
    %1288 = vmatpush2.msra.mxu0 0.0
    %1289 = vmatprep.subr.mxu0 0.0
    %1290 = vmatpush2.msra.mxu0 0.0
    %1291 = vmatprep.subr.mxu0 0.0
    %1292 = vmatpush2.msra.mxu0 0.0
    %1293 = vmatprep.subr.mxu0 0.0
    %1294 = vmatpush2.msra.mxu0 0.0
    %1295 = vmatprep.subr.mxu0 0.0
    %1296 = vmatpush2.msra.mxu0 0.0
    %1297 = vmatprep.subr.mxu0 0.0
    %1298 = vmatpush2.msra.mxu0 0.0
    %1299 = vmatprep.subr.mxu0 0.0
    %1300 = vmatpush2.msra.mxu0 0.0
    %1301 = vmatprep.mubr.f32.mxu0 0.0
    %1302 = vmatmul.mubr.f32.gmra.mxu0 %v1123
    %v1303 = vpop.f32.mrf.mxu0
    %v1304 = vadd.f32 0.001, %v1303
    %v1305 = vpop.f32.mrf.mxu0
    %1306 = vmatprep.mubr.f32.mxu0 0.0
    %1307 = vmatmul.mubr.f32.gmra.mxu0 %v1126
    %v1308 = vpop.f32.mrf.mxu0
    %v1309 = vadd.f32 0.001, %v1308
    %v1310 = vpop.f32.mrf.mxu0
    %1311 = vmatprep.mubr.f32.mxu0 0.0
    %1312 = vmatmul.mubr.f32.gmra.mxu0 %v1129
    %v1313 = vpop.f32.mrf.mxu0
    %v1314 = vadd.f32 0.001, %v1313
    %v1315 = vpop.f32.mrf.mxu0
    %1316 = vmatprep.mubr.f32.mxu0 0.0
    %1317 = vmatmul.mubr.f32.gmra.mxu0 %v1132
    %v1318 = vpop.f32.mrf.mxu0
    %v1319 = vadd.f32 0.001, %v1318
    %v1320 = vpop.f32.mrf.mxu0
    %1321 = vmatprep.mubr.f32.mxu0 0.0
    %1322 = vmatmul.mubr.f32.gmra.mxu0 %v1135
    %v1323 = vpop.f32.mrf.mxu0
    %v1324 = vadd.f32 0.001, %v1323
    %v1325 = vpop.f32.mrf.mxu0
    %1326 = vdwg.mxu0
    %v1327 = vrsqrt.pop %v1304
    %v1328 = vrsqrt.pop %v1309
    %v1329 = vrsqrt.pop %v1314
    %v1330 = vrsqrt.pop %v1319
    %v1331 = vrsqrt.pop %v1324
    %v1332 = vmul.f32 %v1227, %v1327
    %v1333 = vmul.f32 %v1228, %v1328
    %v1334 = vmul.f32 %v1229, %v1329
    %v1335 = vmul.f32 %v1230, %v1330
    %v1336 = vmul.f32 %v1231, %v1331
    %v1337 = vmul.f32 %v1332, 6.0
    %v1338 = vmul.f32 %v1333, 6.0
    %v1339 = vmul.f32 %v1334, 6.0
    %v1340 = vmul.f32 %v1335, 6.0
    %v1341 = vmul.f32 %v1336, 6.0
    %v1342 = vmul.f32 %v1337, 0.5
    %v1343 = vmul.f32 %v1338, 0.5
    %v1344 = vmul.f32 %v1339, 0.5
    %v1345 = vmul.f32 %v1340, 0.5
    %v1346 = vmul.f32 %v1341, 0.5
    %v1347 = vtanh.pop %v1342
    %v1348 = vtanh.pop %v1343
    %v1349 = vtanh.pop %v1344
    %v1350 = vtanh.pop %v1345
    %v1351 = vtanh.pop %v1346
    %v1352 = vadd.f32 %v1347, 1.0
    %v1353 = vadd.f32 %v1348, 1.0
    %v1354 = vadd.f32 %v1349, 1.0
    %v1355 = vadd.f32 %v1350, 1.0
    %v1356 = vadd.f32 %v1351, 1.0
    %v1357 = vmul.f32 %v1352, 0.5
    %v1358 = vmul.f32 %v1353, 0.5
    %v1359 = vmul.f32 %v1354, 0.5
    %v1360 = vmul.f32 %v1355, 0.5
    %v1361 = vmul.f32 %v1356, 0.5
    %v1362 = vmul.f32 %v1357, 6.0
    %v1363 = vmul.f32 %v1358, 6.0
    %v1364 = vmul.f32 %v1359, 6.0
    %v1365 = vmul.f32 %v1360, 6.0
    %v1366 = vmul.f32 %v1361, 6.0
    %v1367 = vsub.f32 %v1362, 5.0
    %v1368 = vsub.f32 %v1363, 5.0
    %v1369 = vsub.f32 %v1364, 5.0
    %v1370 = vsub.f32 %v1365, 5.0
    %v1371 = vsub.f32 %v1366, 5.0
    %v1372 = vmul.f32 %v1367, 10.0
    %v1373 = vmul.f32 %v1368, 10.0
    %v1374 = vmul.f32 %v1369, 10.0
    %v1375 = vmul.f32 %v1370, 10.0
    %v1376 = vmul.f32 %v1371, 10.0
    %v1377 = vmul.f32 %v1372, 0.5
    %v1378 = vmul.f32 %v1373, 0.5
    %v1379 = vmul.f32 %v1374, 0.5
    %v1380 = vmul.f32 %v1375, 0.5
    %v1381 = vmul.f32 %v1376, 0.5
    %v1382 = vtanh.pop %v1377
    %v1383 = vtanh.pop %v1378
    %v1384 = vtanh.pop %v1379
    %v1385 = vtanh.pop %v1380
    %v1386 = vtanh.pop %v1381
    %v1387 = vadd.f32 %v1382, 1.0
    %v1388 = vadd.f32 %v1383, 1.0
    %v1389 = vadd.f32 %v1384, 1.0
    %v1390 = vadd.f32 %v1385, 1.0
    %v1391 = vadd.f32 %v1386, 1.0
    %v1392 = vmul.f32 %v1387, 0.5
    %v1393 = vmul.f32 %v1388, 0.5
    %v1394 = vmul.f32 %v1389, 0.5
    %v1395 = vmul.f32 %v1390, 0.5
    %v1396 = vmul.f32 %v1391, 0.5
    %v1397 = vld [vmem:[%s11] sm:$0xff]
    %v1398 = vld [vmem:[%s11 + $0x8] sm:$0xff]
    %v1399 = vld [vmem:[%s11 + $0x10] sm:$0xff]
    %v1400 = vld [vmem:[%s11 + $0x18] sm:$0xff]
    %v1401 = vld [vmem:[%s11 + $0x20] sm:$0xff]
    %v1403 = vsel %vm708, %v1397, 0
    %v1406 = vsel %vm708, %v1398, 0
    %v1409 = vsel %vm708, %v1399, 0
    %v1412 = vsel %vm708, %v1400, 0
    %v1415 = vsel %vm708, %v1401, 0
    %1417 = vmatprep.subr.mxu0 0.0
    %1418 = vmatpush1.msra.mxu0 0.0
    %1419 = vmatprep.subr.mxu0 0.0
    %1420 = vmatpush1.msra.mxu0 0.0
    %1421 = vmatprep.subr.mxu0 0.0
    %1422 = vmatpush1.msra.mxu0 0.0
    %1423 = vmatprep.subr.mxu0 0.0
    %1424 = vmatpush1.msra.mxu0 0.0
    %1425 = vmatprep.subr.mxu0 0.0
    %1426 = vmatpush1.msra.mxu0 0.0
    %1427 = vmatprep.subr.mxu0 0.0
    %1428 = vmatpush1.msra.mxu0 0.0
    %1429 = vmatprep.subr.mxu0 0.0
    %1430 = vmatpush1.msra.mxu0 0.0
    %1431 = vmatprep.subr.mxu0 0.0
    %1432 = vmatpush1.msra.mxu0 0.0
    %1433 = vmatprep.subr.mxu0 0.0
    %1434 = vmatpush1.msra.mxu0 0.0
    %1435 = vmatprep.subr.mxu0 0.0
    %1436 = vmatpush1.msra.mxu0 0.0
    %1437 = vmatprep.subr.mxu0 0.0
    %1438 = vmatpush1.msra.mxu0 0.0
    %1439 = vmatprep.subr.mxu0 0.0
    %1440 = vmatpush1.msra.mxu0 0.0
    %1441 = vmatprep.subr.mxu0 0.0
    %1442 = vmatpush1.msra.mxu0 0.0
    %1443 = vmatprep.subr.mxu0 0.0
    %1444 = vmatpush1.msra.mxu0 0.0
    %1445 = vmatprep.subr.mxu0 0.0
    %1446 = vmatpush1.msra.mxu0 0.0
    %1447 = vmatprep.subr.mxu0 0.0
    %1448 = vmatpush1.msra.mxu0 %v656
    %1449 = vmatprep.subr.mxu0 0.0
    %1450 = vmatpush2.msra.mxu0 0.0
    %1451 = vmatprep.subr.mxu0 0.0
    %1452 = vmatpush2.msra.mxu0 0.0
    %1453 = vmatprep.subr.mxu0 0.0
    %1454 = vmatpush2.msra.mxu0 0.0
    %1455 = vmatprep.subr.mxu0 0.0
    %1456 = vmatpush2.msra.mxu0 0.0
    %1457 = vmatprep.subr.mxu0 0.0
    %1458 = vmatpush2.msra.mxu0 0.0
    %1459 = vmatprep.subr.mxu0 0.0
    %1460 = vmatpush2.msra.mxu0 0.0
    %1461 = vmatprep.subr.mxu0 0.0
    %1462 = vmatpush2.msra.mxu0 0.0
    %1463 = vmatprep.subr.mxu0 0.0
    %1464 = vmatpush2.msra.mxu0 0.0
    %1465 = vmatprep.subr.mxu0 0.0
    %1466 = vmatpush2.msra.mxu0 0.0
    %1467 = vmatprep.subr.mxu0 0.0
    %1468 = vmatpush2.msra.mxu0 0.0
    %1469 = vmatprep.subr.mxu0 0.0
    %1470 = vmatpush2.msra.mxu0 0.0
    %1471 = vmatprep.subr.mxu0 0.0
    %1472 = vmatpush2.msra.mxu0 0.0
    %1473 = vmatprep.subr.mxu0 0.0
    %1474 = vmatpush2.msra.mxu0 0.0
    %1475 = vmatprep.subr.mxu0 0.0
    %1476 = vmatpush2.msra.mxu0 0.0
    %1477 = vmatprep.subr.mxu0 0.0
    %1478 = vmatpush2.msra.mxu0 0.0
    %1479 = vmatprep.subr.mxu0 0.0
    %1480 = vmatpush2.msra.mxu0 0.0
    %1481 = vmatprep.mubr.f32.mxu0 0.0
    %1482 = vmatmul.mubr.f32.gmra.mxu0 %v1403
    %v1483 = vpop.f32.mrf.mxu0
    %v1484 = vadd.f32 0.0, %v1483
    %v1485 = vpop.f32.mrf.mxu0
    %1486 = vmatprep.mubr.f32.mxu0 0.0
    %1487 = vmatmul.mubr.f32.gmra.mxu0 %v1406
    %v1488 = vpop.f32.mrf.mxu0
    %v1489 = vadd.f32 0.0, %v1488
    %v1490 = vpop.f32.mrf.mxu0
    %1491 = vmatprep.mubr.f32.mxu0 0.0
    %1492 = vmatmul.mubr.f32.gmra.mxu0 %v1409
    %v1493 = vpop.f32.mrf.mxu0
    %v1494 = vadd.f32 0.0, %v1493
    %v1495 = vpop.f32.mrf.mxu0
    %1496 = vmatprep.mubr.f32.mxu0 0.0
    %1497 = vmatmul.mubr.f32.gmra.mxu0 %v1412
    %v1498 = vpop.f32.mrf.mxu0
    %v1499 = vadd.f32 0.0, %v1498
    %v1500 = vpop.f32.mrf.mxu0
    %1501 = vmatprep.mubr.f32.mxu0 0.0
    %1502 = vmatmul.mubr.f32.gmra.mxu0 %v1415
    %v1503 = vpop.f32.mrf.mxu0
    %v1504 = vadd.f32 0.0, %v1503
    %v1505 = vpop.f32.mrf.mxu0
    %1506 = vdwg.mxu0
    %v1507 = vmul.f32 %v1392, %v1484
    %v1508 = vmul.f32 %v1393, %v1489
    %v1509 = vmul.f32 %v1394, %v1494
    %v1510 = vmul.f32 %v1395, %v1499
    %v1511 = vmul.f32 %v1396, %v1504
    %v1512 = vadd.f32 %v1507, 1.0
    %v1513 = vadd.f32 %v1508, 1.0
    %v1514 = vadd.f32 %v1509, 1.0
    %v1515 = vadd.f32 %v1510, 1.0
    %v1516 = vadd.f32 %v1511, 1.0
    %v1517 = vld [vmem:[%s12] sm:$0xff]
    %v1518 = vld [vmem:[%s12 + $0x8] sm:$0xff]
    %v1519 = vld [vmem:[%s12 + $0x10] sm:$0xff]
    %v1520 = vld [vmem:[%s12 + $0x18] sm:$0xff]
    %v1521 = vld [vmem:[%s12 + $0x20] sm:$0xff]
    %v1523 = vsel %vm1121, %v1517, 0
    %v1526 = vsel %vm1121, %v1518, 0
    %v1529 = vsel %vm1121, %v1519, 0
    %v1532 = vsel %vm1121, %v1520, 0
    %v1535 = vsel %vm1121, %v1521, 0
    %1537 = vmatprep.subr.mxu0 0.0
    %1538 = vmatpush1.msra.mxu0 0.0
    %1539 = vmatprep.subr.mxu0 0.0
    %1540 = vmatpush1.msra.mxu0 0.0
    %1541 = vmatprep.subr.mxu0 0.0
    %1542 = vmatpush1.msra.mxu0 0.0
    %1543 = vmatprep.subr.mxu0 0.0
    %1544 = vmatpush1.msra.mxu0 0.0
    %1545 = vmatprep.subr.mxu0 0.0
    %1546 = vmatpush1.msra.mxu0 0.0
    %1547 = vmatprep.subr.mxu0 0.0
    %1548 = vmatpush1.msra.mxu0 0.0
    %1549 = vmatprep.subr.mxu0 0.0
    %1550 = vmatpush1.msra.mxu0 0.0
    %1551 = vmatprep.subr.mxu0 0.0
    %1552 = vmatpush1.msra.mxu0 0.0
    %1553 = vmatprep.subr.mxu0 0.0
    %1554 = vmatpush1.msra.mxu0 0.0
    %1555 = vmatprep.subr.mxu0 0.0
    %1556 = vmatpush1.msra.mxu0 0.0
    %1557 = vmatprep.subr.mxu0 0.0
    %1558 = vmatpush1.msra.mxu0 0.0
    %1559 = vmatprep.subr.mxu0 0.0
    %1560 = vmatpush1.msra.mxu0 %v1516
    %1561 = vmatprep.subr.mxu0 0.0
    %1562 = vmatpush1.msra.mxu0 %v1515
    %1563 = vmatprep.subr.mxu0 0.0
    %1564 = vmatpush1.msra.mxu0 %v1514
    %1565 = vmatprep.subr.mxu0 0.0
    %1566 = vmatpush1.msra.mxu0 %v1513
    %1567 = vmatprep.subr.mxu0 0.0
    %1568 = vmatpush1.msra.mxu0 %v1512
    %1569 = vmatprep.subr.mxu0 0.0
    %1570 = vmatpush2.msra.mxu0 0.0
    %1571 = vmatprep.subr.mxu0 0.0
    %1572 = vmatpush2.msra.mxu0 0.0
    %1573 = vmatprep.subr.mxu0 0.0
    %1574 = vmatpush2.msra.mxu0 0.0
    %1575 = vmatprep.subr.mxu0 0.0
    %1576 = vmatpush2.msra.mxu0 0.0
    %1577 = vmatprep.subr.mxu0 0.0
    %1578 = vmatpush2.msra.mxu0 0.0
    %1579 = vmatprep.subr.mxu0 0.0
    %1580 = vmatpush2.msra.mxu0 0.0
    %1581 = vmatprep.subr.mxu0 0.0
    %1582 = vmatpush2.msra.mxu0 0.0
    %1583 = vmatprep.subr.mxu0 0.0
    %1584 = vmatpush2.msra.mxu0 0.0
    %1585 = vmatprep.subr.mxu0 0.0
    %1586 = vmatpush2.msra.mxu0 0.0
    %1587 = vmatprep.subr.mxu0 0.0
    %1588 = vmatpush2.msra.mxu0 0.0
    %1589 = vmatprep.subr.mxu0 0.0
    %1590 = vmatpush2.msra.mxu0 0.0
    %1591 = vmatprep.subr.mxu0 0.0
    %1592 = vmatpush2.msra.mxu0 0.0
    %1593 = vmatprep.subr.mxu0 0.0
    %1594 = vmatpush2.msra.mxu0 0.0
    %1595 = vmatprep.subr.mxu0 0.0
    %1596 = vmatpush2.msra.mxu0 0.0
    %1597 = vmatprep.subr.mxu0 0.0
    %1598 = vmatpush2.msra.mxu0 0.0
    %1599 = vmatprep.subr.mxu0 0.0
    %1600 = vmatpush2.msra.mxu0 0.0
    %1601 = vmatprep.mubr.f32.mxu0 0.0
    %1602 = vmatmul.mubr.f32.gmra.mxu0 %v1523
    %v1603 = vpop.f32.mrf.mxu0
    %v1604 = vadd.f32 0.0, %v1603
    %v1605 = vpop.f32.mrf.mxu0
    %1606 = vmatprep.mubr.f32.mxu0 0.0
    %1607 = vmatmul.mubr.f32.gmra.mxu0 %v1526
    %v1608 = vpop.f32.mrf.mxu0
    %v1609 = vadd.f32 0.0, %v1608
    %v1610 = vpop.f32.mrf.mxu0
    %1611 = vmatprep.mubr.f32.mxu0 0.0
    %1612 = vmatmul.mubr.f32.gmra.mxu0 %v1529
    %v1613 = vpop.f32.mrf.mxu0
    %v1614 = vadd.f32 0.0, %v1613
    %v1615 = vpop.f32.mrf.mxu0
    %1616 = vmatprep.mubr.f32.mxu0 0.0
    %1617 = vmatmul.mubr.f32.gmra.mxu0 %v1532
    %v1618 = vpop.f32.mrf.mxu0
    %v1619 = vadd.f32 0.0, %v1618
    %v1620 = vpop.f32.mrf.mxu0
    %1621 = vmatprep.mubr.f32.mxu0 0.0
    %1622 = vmatmul.mubr.f32.gmra.mxu0 %v1535
    %v1623 = vpop.f32.mrf.mxu0
    %v1624 = vadd.f32 0.0, %v1623
    %v1625 = vpop.f32.mrf.mxu0
    %1626 = vdwg.mxu0
    %v1627 = vmul.f32 %v1512, %v1604
    %v1628 = vmul.f32 %v1513, %v1609
    %v1629 = vmul.f32 %v1514, %v1614
    %v1630 = vmul.f32 %v1515, %v1619
    %v1631 = vmul.f32 %v1516, %v1624
    %s1632 = scalar_lea.vmem %s12, 40
    %v1633 = vld [vmem:[%s1632] sm:$0xff]
    %v1634 = vld [vmem:[%s1632 + $0x8] sm:$0xff]
    %v1635 = vld [vmem:[%s1632 + $0x10] sm:$0xff]
    %v1636 = vld [vmem:[%s1632 + $0x18] sm:$0xff]
    %v1637 = vld [vmem:[%s1632 + $0x20] sm:$0xff]
    %v1639 = vsel %vm1121, %v1633, 0
    %v1642 = vsel %vm1121, %v1634, 0
    %v1645 = vsel %vm1121, %v1635, 0
    %v1648 = vsel %vm1121, %v1636, 0
    %v1651 = vsel %vm1121, %v1637, 0
    %1653 = vmatprep.subr.mxu0 0.0
    %1654 = vmatpush1.msra.mxu0 0.0
    %1655 = vmatprep.subr.mxu0 0.0
    %1656 = vmatpush1.msra.mxu0 0.0
    %1657 = vmatprep.subr.mxu0 0.0
    %1658 = vmatpush1.msra.mxu0 0.0
    %1659 = vmatprep.subr.mxu0 0.0
    %1660 = vmatpush1.msra.mxu0 0.0
    %1661 = vmatprep.subr.mxu0 0.0
    %1662 = vmatpush1.msra.mxu0 0.0
    %1663 = vmatprep.subr.mxu0 0.0
    %1664 = vmatpush1.msra.mxu0 0.0
    %1665 = vmatprep.subr.mxu0 0.0
    %1666 = vmatpush1.msra.mxu0 0.0
    %1667 = vmatprep.subr.mxu0 0.0
    %1668 = vmatpush1.msra.mxu0 0.0
    %1669 = vmatprep.subr.mxu0 0.0
    %1670 = vmatpush1.msra.mxu0 0.0
    %1671 = vmatprep.subr.mxu0 0.0
    %1672 = vmatpush1.msra.mxu0 0.0
    %1673 = vmatprep.subr.mxu0 0.0
    %1674 = vmatpush1.msra.mxu0 0.0
    %1675 = vmatprep.subr.mxu0 0.0
    %1676 = vmatpush1.msra.mxu0 %v1631
    %1677 = vmatprep.subr.mxu0 0.0
    %1678 = vmatpush1.msra.mxu0 %v1630
    %1679 = vmatprep.subr.mxu0 0.0
    %1680 = vmatpush1.msra.mxu0 %v1629
    %1681 = vmatprep.subr.mxu0 0.0
    %1682 = vmatpush1.msra.mxu0 %v1628
    %1683 = vmatprep.subr.mxu0 0.0
    %1684 = vmatpush1.msra.mxu0 %v1627
    %1685 = vmatprep.subr.mxu0 0.0
    %1686 = vmatpush2.msra.mxu0 0.0
    %1687 = vmatprep.subr.mxu0 0.0
    %1688 = vmatpush2.msra.mxu0 0.0
    %1689 = vmatprep.subr.mxu0 0.0
    %1690 = vmatpush2.msra.mxu0 0.0
    %1691 = vmatprep.subr.mxu0 0.0
    %1692 = vmatpush2.msra.mxu0 0.0
    %1693 = vmatprep.subr.mxu0 0.0
    %1694 = vmatpush2.msra.mxu0 0.0
    %1695 = vmatprep.subr.mxu0 0.0
    %1696 = vmatpush2.msra.mxu0 0.0
    %1697 = vmatprep.subr.mxu0 0.0
    %1698 = vmatpush2.msra.mxu0 0.0
    %1699 = vmatprep.subr.mxu0 0.0
    %1700 = vmatpush2.msra.mxu0 0.0
    %1701 = vmatprep.subr.mxu0 0.0
    %1702 = vmatpush2.msra.mxu0 0.0
    %1703 = vmatprep.subr.mxu0 0.0
    %1704 = vmatpush2.msra.mxu0 0.0
    %1705 = vmatprep.subr.mxu0 0.0
    %1706 = vmatpush2.msra.mxu0 0.0
    %1707 = vmatprep.subr.mxu0 0.0
    %1708 = vmatpush2.msra.mxu0 0.0
    %1709 = vmatprep.subr.mxu0 0.0
    %1710 = vmatpush2.msra.mxu0 0.0
    %1711 = vmatprep.subr.mxu0 0.0
    %1712 = vmatpush2.msra.mxu0 0.0
    %1713 = vmatprep.subr.mxu0 0.0
    %1714 = vmatpush2.msra.mxu0 0.0
    %1715 = vmatprep.subr.mxu0 0.0
    %1716 = vmatpush2.msra.mxu0 0.0
    %1717 = vmatprep.mubr.f32.mxu0 0.0
    %1718 = vmatmul.mubr.f32.gmra.mxu0 %v1639
    %v1719 = vpop.f32.mrf.mxu0
    %v1720 = vadd.f32 0.0, %v1719
    %v1721 = vpop.f32.mrf.mxu0
    %1722 = vmatprep.mubr.f32.mxu0 0.0
    %1723 = vmatmul.mubr.f32.gmra.mxu0 %v1642
    %v1724 = vpop.f32.mrf.mxu0
    %v1725 = vadd.f32 0.0, %v1724
    %v1726 = vpop.f32.mrf.mxu0
    %1727 = vmatprep.mubr.f32.mxu0 0.0
    %1728 = vmatmul.mubr.f32.gmra.mxu0 %v1645
    %v1729 = vpop.f32.mrf.mxu0
    %v1730 = vadd.f32 0.0, %v1729
    %v1731 = vpop.f32.mrf.mxu0
    %1732 = vmatprep.mubr.f32.mxu0 0.0
    %1733 = vmatmul.mubr.f32.gmra.mxu0 %v1648
    %v1734 = vpop.f32.mrf.mxu0
    %v1735 = vadd.f32 0.0, %v1734
    %v1736 = vpop.f32.mrf.mxu0
    %1737 = vmatprep.mubr.f32.mxu0 0.0
    %1738 = vmatmul.mubr.f32.gmra.mxu0 %v1651
    %v1739 = vpop.f32.mrf.mxu0
    %v1740 = vadd.f32 0.0, %v1739
    %v1741 = vpop.f32.mrf.mxu0
    %1742 = vdwg.mxu0
    %v1743 = vmul.f32 %v1627, %v1720
    %v1744 = vmul.f32 %v1628, %v1725
    %v1745 = vmul.f32 %v1629, %v1730
    %v1746 = vmul.f32 %v1630, %v1735
    %v1747 = vmul.f32 %v1631, %v1740
    %s1748 = scalar_lea.vmem %s12, 80
    %v1749 = vld [vmem:[%s1748] sm:$0xff]
    %v1750 = vld [vmem:[%s1748 + $0x8] sm:$0xff]
    %v1751 = vld [vmem:[%s1748 + $0x10] sm:$0xff]
    %v1752 = vld [vmem:[%s1748 + $0x18] sm:$0xff]
    %v1753 = vld [vmem:[%s1748 + $0x20] sm:$0xff]
    %v1755 = vsel %vm1121, %v1749, 0
    %v1758 = vsel %vm1121, %v1750, 0
    %v1761 = vsel %vm1121, %v1751, 0
    %v1764 = vsel %vm1121, %v1752, 0
    %v1767 = vsel %vm1121, %v1753, 0
    %1769 = vmatprep.subr.mxu0 0.0
    %1770 = vmatpush1.msra.mxu0 0.0
    %1771 = vmatprep.subr.mxu0 0.0
    %1772 = vmatpush1.msra.mxu0 0.0
    %1773 = vmatprep.subr.mxu0 0.0
    %1774 = vmatpush1.msra.mxu0 0.0
    %1775 = vmatprep.subr.mxu0 0.0
    %1776 = vmatpush1.msra.mxu0 0.0
    %1777 = vmatprep.subr.mxu0 0.0
    %1778 = vmatpush1.msra.mxu0 0.0
    %1779 = vmatprep.subr.mxu0 0.0
    %1780 = vmatpush1.msra.mxu0 0.0
    %1781 = vmatprep.subr.mxu0 0.0
    %1782 = vmatpush1.msra.mxu0 0.0
    %1783 = vmatprep.subr.mxu0 0.0
    %1784 = vmatpush1.msra.mxu0 0.0
    %1785 = vmatprep.subr.mxu0 0.0
    %1786 = vmatpush1.msra.mxu0 0.0
    %1787 = vmatprep.subr.mxu0 0.0
    %1788 = vmatpush1.msra.mxu0 0.0
    %1789 = vmatprep.subr.mxu0 0.0
    %1790 = vmatpush1.msra.mxu0 0.0
    %1791 = vmatprep.subr.mxu0 0.0
    %1792 = vmatpush1.msra.mxu0 %v1747
    %1793 = vmatprep.subr.mxu0 0.0
    %1794 = vmatpush1.msra.mxu0 %v1746
    %1795 = vmatprep.subr.mxu0 0.0
    %1796 = vmatpush1.msra.mxu0 %v1745
    %1797 = vmatprep.subr.mxu0 0.0
    %1798 = vmatpush1.msra.mxu0 %v1744
    %1799 = vmatprep.subr.mxu0 0.0
    %1800 = vmatpush1.msra.mxu0 %v1743
    %1801 = vmatprep.subr.mxu0 0.0
    %1802 = vmatpush2.msra.mxu0 0.0
    %1803 = vmatprep.subr.mxu0 0.0
    %1804 = vmatpush2.msra.mxu0 0.0
    %1805 = vmatprep.subr.mxu0 0.0
    %1806 = vmatpush2.msra.mxu0 0.0
    %1807 = vmatprep.subr.mxu0 0.0
    %1808 = vmatpush2.msra.mxu0 0.0
    %1809 = vmatprep.subr.mxu0 0.0
    %1810 = vmatpush2.msra.mxu0 0.0
    %1811 = vmatprep.subr.mxu0 0.0
    %1812 = vmatpush2.msra.mxu0 0.0
    %1813 = vmatprep.subr.mxu0 0.0
    %1814 = vmatpush2.msra.mxu0 0.0
    %1815 = vmatprep.subr.mxu0 0.0
    %1816 = vmatpush2.msra.mxu0 0.0
    %1817 = vmatprep.subr.mxu0 0.0
    %1818 = vmatpush2.msra.mxu0 0.0
    %1819 = vmatprep.subr.mxu0 0.0
    %1820 = vmatpush2.msra.mxu0 0.0
    %1821 = vmatprep.subr.mxu0 0.0
    %1822 = vmatpush2.msra.mxu0 0.0
    %1823 = vmatprep.subr.mxu0 0.0
    %1824 = vmatpush2.msra.mxu0 0.0
    %1825 = vmatprep.subr.mxu0 0.0
    %1826 = vmatpush2.msra.mxu0 0.0
    %1827 = vmatprep.subr.mxu0 0.0
    %1828 = vmatpush2.msra.mxu0 0.0
    %1829 = vmatprep.subr.mxu0 0.0
    %1830 = vmatpush2.msra.mxu0 0.0
    %1831 = vmatprep.subr.mxu0 0.0
    %1832 = vmatpush2.msra.mxu0 0.0
    %1833 = vmatprep.mubr.f32.mxu0 0.0
    %1834 = vmatmul.mubr.f32.gmra.mxu0 %v1755
    %v1835 = vpop.f32.mrf.mxu0
    %v1836 = vadd.f32 0.0, %v1835
    %v1837 = vpop.f32.mrf.mxu0
    %1838 = vmatprep.mubr.f32.mxu0 0.0
    %1839 = vmatmul.mubr.f32.gmra.mxu0 %v1758
    %v1840 = vpop.f32.mrf.mxu0
    %v1841 = vadd.f32 0.0, %v1840
    %v1842 = vpop.f32.mrf.mxu0
    %1843 = vmatprep.mubr.f32.mxu0 0.0
    %1844 = vmatmul.mubr.f32.gmra.mxu0 %v1761
    %v1845 = vpop.f32.mrf.mxu0
    %v1846 = vadd.f32 0.0, %v1845
    %v1847 = vpop.f32.mrf.mxu0
    %1848 = vmatprep.mubr.f32.mxu0 0.0
    %1849 = vmatmul.mubr.f32.gmra.mxu0 %v1764
    %v1850 = vpop.f32.mrf.mxu0
    %v1851 = vadd.f32 0.0, %v1850
    %v1852 = vpop.f32.mrf.mxu0
    %1853 = vmatprep.mubr.f32.mxu0 0.0
    %1854 = vmatmul.mubr.f32.gmra.mxu0 %v1767
    %v1855 = vpop.f32.mrf.mxu0
    %v1856 = vadd.f32 0.0, %v1855
    %v1857 = vpop.f32.mrf.mxu0
    %1858 = vdwg.mxu0
    %v1859 = vmul.f32 %v1743, %v1836
    %v1860 = vmul.f32 %v1744, %v1841
    %v1861 = vmul.f32 %v1745, %v1846
    %v1862 = vmul.f32 %v1746, %v1851
    %v1863 = vmul.f32 %v1747, %v1856
    %v1864 = vld [vmem:[%s13] sm:$0x1f]
    %v1866 = vsel %vm1121, %v1864, 0
    %1868 = vmatprep.subr.mxu0 0.0
    %1869 = vmatpush1.msra.mxu0 0.0
    %1870 = vmatprep.subr.mxu0 0.0
    %1871 = vmatpush1.msra.mxu0 0.0
    %1872 = vmatprep.subr.mxu0 0.0
    %1873 = vmatpush1.msra.mxu0 0.0
    %1874 = vmatprep.subr.mxu0 0.0
    %1875 = vmatpush1.msra.mxu0 0.0
    %1876 = vmatprep.subr.mxu0 0.0
    %1877 = vmatpush1.msra.mxu0 0.0
    %1878 = vmatprep.subr.mxu0 0.0
    %1879 = vmatpush1.msra.mxu0 0.0
    %1880 = vmatprep.subr.mxu0 0.0
    %1881 = vmatpush1.msra.mxu0 0.0
    %1882 = vmatprep.subr.mxu0 0.0
    %1883 = vmatpush1.msra.mxu0 0.0
    %1884 = vmatprep.subr.mxu0 0.0
    %1885 = vmatpush1.msra.mxu0 0.0
    %1886 = vmatprep.subr.mxu0 0.0
    %1887 = vmatpush1.msra.mxu0 0.0
    %1888 = vmatprep.subr.mxu0 0.0
    %1889 = vmatpush1.msra.mxu0 0.0
    %1890 = vmatprep.subr.mxu0 0.0
    %1891 = vmatpush1.msra.mxu0 %v1863
    %1892 = vmatprep.subr.mxu0 0.0
    %1893 = vmatpush1.msra.mxu0 %v1862
    %1894 = vmatprep.subr.mxu0 0.0
    %1895 = vmatpush1.msra.mxu0 %v1861
    %1896 = vmatprep.subr.mxu0 0.0
    %1897 = vmatpush1.msra.mxu0 %v1860
    %1898 = vmatprep.subr.mxu0 0.0
    %1899 = vmatpush1.msra.mxu0 %v1859
    %1900 = vmatprep.subr.mxu0 0.0
    %1901 = vmatpush2.msra.mxu0 0.0
    %1902 = vmatprep.subr.mxu0 0.0
    %1903 = vmatpush2.msra.mxu0 0.0
    %1904 = vmatprep.subr.mxu0 0.0
    %1905 = vmatpush2.msra.mxu0 0.0
    %1906 = vmatprep.subr.mxu0 0.0
    %1907 = vmatpush2.msra.mxu0 0.0
    %1908 = vmatprep.subr.mxu0 0.0
    %1909 = vmatpush2.msra.mxu0 0.0
    %1910 = vmatprep.subr.mxu0 0.0
    %1911 = vmatpush2.msra.mxu0 0.0
    %1912 = vmatprep.subr.mxu0 0.0
    %1913 = vmatpush2.msra.mxu0 0.0
    %1914 = vmatprep.subr.mxu0 0.0
    %1915 = vmatpush2.msra.mxu0 0.0
    %1916 = vmatprep.subr.mxu0 0.0
    %1917 = vmatpush2.msra.mxu0 0.0
    %1918 = vmatprep.subr.mxu0 0.0
    %1919 = vmatpush2.msra.mxu0 0.0
    %1920 = vmatprep.subr.mxu0 0.0
    %1921 = vmatpush2.msra.mxu0 0.0
    %1922 = vmatprep.subr.mxu0 0.0
    %1923 = vmatpush2.msra.mxu0 0.0
    %1924 = vmatprep.subr.mxu0 0.0
    %1925 = vmatpush2.msra.mxu0 0.0
    %1926 = vmatprep.subr.mxu0 0.0
    %1927 = vmatpush2.msra.mxu0 0.0
    %1928 = vmatprep.subr.mxu0 0.0
    %1929 = vmatpush2.msra.mxu0 0.0
    %1930 = vmatprep.subr.mxu0 0.0
    %1931 = vmatpush2.msra.mxu0 0.0
    %1932 = vmatprep.mubr.f32.mxu0 0.0
    %1933 = vmatmul.mubr.f32.gmra.mxu0 %v1866
    %v1934 = vpop.f32.mrf.mxu0
    %v1935 = vadd.f32 0.0, %v1934
    %v1936 = vpop.f32.mrf.mxu0
    %1937 = vdwg.mxu0
    %v1938 = vld [vmem:[%s14] sm:$0x7]
    %v1939 = vld [vmem:[%s15] sm:$0x7]
    %1941 = vset.pattern.permute.xlu0 0
    %1942 = vperm.xlu0 %1941, %v1939
    %v1943 = vpop.permute.xlu0 %1942
    %v1946 = vsel %vm64, %v1938, 0
    %v1949 = vsel %vm77, %v1935, 0
    %1951 = vmatprep.subr.mxu0 0.0
    %1952 = vmatpush1.msra.mxu0 0.0
    %1953 = vmatprep.subr.mxu0 0.0
    %1954 = vmatpush1.msra.mxu0 0.0
    %1955 = vmatprep.subr.mxu0 0.0
    %1956 = vmatpush1.msra.mxu0 0.0
    %1957 = vmatprep.subr.mxu0 0.0
    %1958 = vmatpush1.msra.mxu0 0.0
    %1959 = vmatprep.subr.mxu0 0.0
    %1960 = vmatpush1.msra.mxu0 0.0
    %1961 = vmatprep.subr.mxu0 0.0
    %1962 = vmatpush1.msra.mxu0 0.0
    %1963 = vmatprep.subr.mxu0 0.0
    %1964 = vmatpush1.msra.mxu0 0.0
    %1965 = vmatprep.subr.mxu0 0.0
    %1966 = vmatpush1.msra.mxu0 0.0
    %1967 = vmatprep.subr.mxu0 0.0
    %1968 = vmatpush1.msra.mxu0 0.0
    %1969 = vmatprep.subr.mxu0 0.0
    %1970 = vmatpush1.msra.mxu0 0.0
    %1971 = vmatprep.subr.mxu0 0.0
    %1972 = vmatpush1.msra.mxu0 0.0
    %1973 = vmatprep.subr.mxu0 0.0
    %1974 = vmatpush1.msra.mxu0 0.0
    %1975 = vmatprep.subr.mxu0 0.0
    %1976 = vmatpush1.msra.mxu0 0.0
    %1977 = vmatprep.subr.mxu0 0.0
    %1978 = vmatpush1.msra.mxu0 0.0
    %1979 = vmatprep.subr.mxu0 0.0
    %1980 = vmatpush1.msra.mxu0 0.0
    %1981 = vmatprep.subr.mxu0 0.0
    %1982 = vmatpush1.msra.mxu0 %v1949
    %1983 = vmatprep.subr.mxu0 0.0
    %1984 = vmatpush2.msra.mxu0 0.0
    %1985 = vmatprep.subr.mxu0 0.0
    %1986 = vmatpush2.msra.mxu0 0.0
    %1987 = vmatprep.subr.mxu0 0.0
    %1988 = vmatpush2.msra.mxu0 0.0
    %1989 = vmatprep.subr.mxu0 0.0
    %1990 = vmatpush2.msra.mxu0 0.0
    %1991 = vmatprep.subr.mxu0 0.0
    %1992 = vmatpush2.msra.mxu0 0.0
    %1993 = vmatprep.subr.mxu0 0.0
    %1994 = vmatpush2.msra.mxu0 0.0
    %1995 = vmatprep.subr.mxu0 0.0
    %1996 = vmatpush2.msra.mxu0 0.0
    %1997 = vmatprep.subr.mxu0 0.0
    %1998 = vmatpush2.msra.mxu0 0.0
    %1999 = vmatprep.subr.mxu0 0.0
    %2000 = vmatpush2.msra.mxu0 0.0
    %2001 = vmatprep.subr.mxu0 0.0
    %2002 = vmatpush2.msra.mxu0 0.0
    %2003 = vmatprep.subr.mxu0 0.0
    %2004 = vmatpush2.msra.mxu0 0.0
    %2005 = vmatprep.subr.mxu0 0.0
    %2006 = vmatpush2.msra.mxu0 0.0
    %2007 = vmatprep.subr.mxu0 0.0
    %2008 = vmatpush2.msra.mxu0 0.0
    %2009 = vmatprep.subr.mxu0 0.0
    %2010 = vmatpush2.msra.mxu0 0.0
    %2011 = vmatprep.subr.mxu0 0.0
    %2012 = vmatpush2.msra.mxu0 0.0
    %2013 = vmatprep.subr.mxu0 0.0
    %2014 = vmatpush2.msra.mxu0 0.0
    %2015 = vmatprep.mubr.f32.mxu0 0.0
    %2016 = vmatmul.mubr.f32.gmra.mxu0 %v1946
    %v2017 = vpop.f32.mrf.mxu0
    %v2018 = vadd.f32 %v1943, %v2017
    %v2019 = vpop.f32.mrf.mxu0
    %2020 = vdwg.mxu0
    %vm2021 = vcmask 59392
    %2022 = vst.msk [vmem:[#allocation2] sm:$0x7] %vm2021, %v2018
    %vm2023 = vcmask 61440
    %2024 = vst.msk [vmem:[#allocation4] sm:$0x1f] %vm2023, %v1935
    %2025 = vst.msk [vmem:[#allocation6] sm:$0xff] %vm708, %v656
    %2026 = vst.msk [vmem:[%s19] sm:$0xff] %vm708, %v1392
    %2027 = vst.msk [vmem:[%s19 + $0x8] sm:$0xff] %vm708, %v1393
    %2028 = vst.msk [vmem:[%s19 + $0x10] sm:$0xff] %vm708, %v1394
    %2029 = vst.msk [vmem:[%s19 + $0x18] sm:$0xff] %vm708, %v1395
    %2030 = vst.msk [vmem:[%s19 + $0x20] sm:$0xff] %vm708, %v1396
    // Predicated region
    $region66: #{tpu_custom_call.1} parent=1 // pred_check
      _
    $region67: #{tpu_custom_call.1} parent=1 // pred_check_branch
      %2032 = sbr.rel (0) target = $region69
    $region68: #{tpu_custom_call.1} parent=1 // pred_region
      %s2034 = ssub.s32 64, 64
      %2035 = vsyncadd [#allocation3], %s2034
      %s2037 = sshll.u32 [#allocation2], 4
      %s2038 = int_to_ptr.vmem [resolvable:$true] %s2037
      %2040 = dma.vmem_to_hbm [thread:$0]  %s2038, 64, %s16, [#allocation3]
    $region69: #{tpu_custom_call.1} parent=1 // pred_fallthru
      _
    // Predicated region
    $region70: #{tpu_custom_call.1} parent=1 // pred_check
      _
    $region71: #{tpu_custom_call.1} parent=1 // pred_check_branch
      %2042 = sbr.rel (0) target = $region73
    $region72: #{tpu_custom_call.1} parent=1 // pred_region
      %s2044 = ssub.s32 128, 128
      %2045 = vsyncadd [#allocation5], %s2044
      %s2047 = sshll.u32 [#allocation4], 4
      %s2048 = int_to_ptr.vmem [resolvable:$true] %s2047
      %2050 = dma.vmem_to_hbm [thread:$0]  %s2048, 128, %s17, [#allocation5]
    $region73: #{tpu_custom_call.1} parent=1 // pred_fallthru
      _
    // Predicated region
    $region74: #{tpu_custom_call.1} parent=1 // pred_check
      _
    $region75: #{tpu_custom_call.1} parent=1 // pred_check_branch
      %2052 = sbr.rel (0) target = $region77
    $region76: #{tpu_custom_call.1} parent=1 // pred_region
      %s2054 = ssub.s32 128, 128
      %2055 = vsyncadd [#allocation5], %s2054
      %s2057 = sshll.u32 [#allocation6], 4
      %s2058 = int_to_ptr.vmem [resolvable:$true] %s2057
      %2060 = dma.vmem_to_hbm [thread:$0]  %s2058, 128, %s18, [#allocation5]
    $region77: #{tpu_custom_call.1} parent=1 // pred_fallthru
      _
    // Predicated region
    $region78: #{tpu_custom_call.1} parent=1 // pred_check
      _
    $region79: #{tpu_custom_call.1} parent=1 // pred_check_branch
      %2062 = sbr.rel (0) target = $region81
    $region80: #{tpu_custom_call.1} parent=1 // pred_region
      _
    $region81: #{tpu_custom_call.1} parent=1 // pred_fallthru
      _
    // Predicated region
    $region82: #{tpu_custom_call.1} parent=1 // pred_check
      _
    $region83: #{tpu_custom_call.1} parent=1 // pred_check_branch
      %2064 = sbr.rel (0) target = $region85
    $region84: #{tpu_custom_call.1} parent=1 // pred_region
      %2065 = dma.done [#allocation3], 64
    $region85: #{tpu_custom_call.1} parent=1 // pred_fallthru
      _
    // Predicated region
    $region86: #{tpu_custom_call.1} parent=1 // pred_check
      _
    $region87: #{tpu_custom_call.1} parent=1 // pred_check_branch
      %2067 = sbr.rel (0) target = $region89
    $region88: #{tpu_custom_call.1} parent=1 // pred_region
      %2068 = dma.done [#allocation5], 128
    $region89: #{tpu_custom_call.1} parent=1 // pred_fallthru
      _
    // Predicated region
    $region90: #{tpu_custom_call.1} parent=1 // pred_check
      _
    $region91: #{tpu_custom_call.1} parent=1 // pred_check_branch
      %2070 = sbr.rel (0) target = $region93
    $region92: #{tpu_custom_call.1} parent=1 // pred_region
      %2071 = dma.done [#allocation5], 128
    $region93: #{tpu_custom_call.1} parent=1 // pred_fallthru
      _
    // Predicated region
    $region94: #{tpu_custom_call.1} parent=1 // pred_check
      _
    $region95: #{tpu_custom_call.1} parent=1 // pred_check_branch
      %2073 = sbr.rel (0) target = $region97
    $region96: #{tpu_custom_call.1} parent=1 // pred_region
      _
    $region97: #{tpu_custom_call.1} parent=1 // pred_fallthru
      _
    %2074 = vsyncpa [#allocation3], 1
    %2075 = vsyncpa [#allocation5], 1

</llo_original>
